<compile_context>
chip_gen: v7x
topology: tpu7x:2x2x1
jax: 0.10.0
libtpu: 0.0.40
codegen_flags: <defaults>
</compile_context>

<pallas_src>
import functools

import jax
import jax.numpy as jnp
from jax.experimental import pallas as pl
from jax.experimental.pallas import tpu as pltpu

_MIB = 1024 * 1024


def _round_up(x: int, m: int) -> int:
    return (x + m - 1) // m * m


def _fused_gather_linear_kernel(row_ref, col_ref, z_ref, wt_ref, wb_ref,
                                b_ref, o_ref):
    # row_ref/col_ref: [TE, 1] int32  (edge endpoints for this tile)
    # z_ref:           [N, C]         compute dtype, VMEM-resident
    # wt_ref/wb_ref:   [C, OUT]       compute dtype, VMEM-resident
    # b_ref:           [1, OUT]       f32, VMEM-resident
    # o_ref:           [TE, OUT]
    te = row_ref.shape[0]
    n = z_ref.shape[0]
    cdt = z_ref.dtype
    node_ids = jax.lax.broadcasted_iota(jnp.int32, (te, n), 1)
    # One-hot row selection on the MXU: exact (picks rows of z verbatim),
    # no dynamic gather / no HBM intermediates.
    oh_r = (row_ref[...] == node_ids).astype(cdt)        # [TE, N]
    oh_c = (col_ref[...] == node_ids).astype(cdt)        # [TE, N]
    xr = jnp.dot(oh_r, z_ref[...], preferred_element_type=jnp.float32).astype(cdt)
    xc = jnp.dot(oh_c, z_ref[...], preferred_element_type=jnp.float32).astype(cdt)
    acc = jnp.dot(xr, wt_ref[...], preferred_element_type=jnp.float32)
    acc = acc + jnp.dot(xc, wb_ref[...], preferred_element_type=jnp.float32)
    o_ref[...] = (acc + b_ref[...]).astype(o_ref.dtype)


def _pregathered_linear_kernel(xr_ref, xc_ref, wt_ref, wb_ref, b_ref, o_ref):
    # Fallback for very large N: the two halves were gathered outside.
    acc = jnp.dot(xr_ref[...], wt_ref[...], preferred_element_type=jnp.float32)
    acc = acc + jnp.dot(xc_ref[...], wb_ref[...],
                        preferred_element_type=jnp.float32)
    o_ref[...] = (acc + b_ref[...]).astype(o_ref.dtype)


@functools.partial(
    jax.jit,
    static_argnames=("tile_e", "use_bf16", "out_dtype", "fuse_gather_max_nodes"))
def mlp_predictor_forward(z, edge_index, weight_t, bias, *,
                          tile_e=4096, use_bf16=True, out_dtype=None,
                          fuse_gather_max_nodes=512):
    """Pallas implementation of MLPPredictor.forward.

    z:          [N, C]        node embeddings
    edge_index: [2, E]        (row, col); cast to int32 internally
    weight_t:   [2C, OUT]     transpose of PyTorch lin.weight [OUT, 2C]
    bias:       [OUT]
    returns:    [E, OUT]      in `out_dtype` (bf16 by default when use_bf16)
    """
    N, C = z.shape
    K, OUT = weight_t.shape
    assert K == 2 * C, "weight_t must have shape [2*in_channels, out_channels]"
    E = edge_index.shape[1]

    compute_dtype = jnp.bfloat16 if use_bf16 else z.dtype
    if out_dtype is None:
        out_dtype = jnp.bfloat16 if use_bf16 else z.dtype
    cdt_bytes = jnp.dtype(compute_dtype).itemsize
    out_bytes = jnp.dtype(out_dtype).itemsize

    # ---- static tiling decisions ------------------------------------------
    tile = max(256, _round_up(int(tile_e), 256))       # 256-multiple (MXU M dim)
    tile = min(tile, _round_up(max(E, 1), 256))        # don't overshoot tiny E
    E_P = _round_up(max(E, 1), tile)                   # pad E (rows only)
    grid = (E_P // tile,)

    # Fuse the gather in-kernel when z comfortably fits VMEM and the one-hot
    # selection cost stays small relative to the memory-bound roofline.
    fused = (N <= fuse_gather_max_nodes) and (N * C * cdt_bytes <= 8 * _MIB)

    # ---- JAX glue: indices / weights --------------------------------------
    row = edge_index[0].astype(jnp.int32)
    col = edge_index[1].astype(jnp.int32)
    if E_P != E:
        pad = E_P - E
        row = jnp.pad(row, (0, pad))                   # index 0 is always valid
        col = jnp.pad(col, (0, pad))

    w_top = weight_t[:C, :].astype(compute_dtype)      # [C, OUT]
    w_bot = weight_t[C:, :].astype(compute_dtype)      # [C, OUT]
    bias2d = bias.astype(jnp.float32).reshape(1, OUT)
    weight_bytes = 2 * C * OUT * cdt_bytes + OUT * 4

    if fused:
        z_c = z.astype(compute_dtype)                  # [N, C], stays in VMEM
        row2 = row.reshape(E_P, 1)
        col2 = col.reshape(E_P, 1)
        kernel = _fused_gather_linear_kernel
        operands = (row2, col2, z_c, w_top, w_bot, bias2d)
        in_specs = [
            pl.BlockSpec((tile, 1), lambda i: (i, 0)),   # row ids
            pl.BlockSpec((tile, 1), lambda i: (i, 0)),   # col ids
            # Constant index maps -> fetched once, VMEM-resident.
            pl.BlockSpec((N, C), lambda i: (0, 0)),      # z (whole)
            pl.BlockSpec((C, OUT), lambda i: (0, 0)),    # W_top
            pl.BlockSpec((C, OUT), lambda i: (0, 0)),    # W_bot
            pl.BlockSpec((1, OUT), lambda i: (0, 0)),    # bias
        ]
        flops = E_P * 4 * C * (N + OUT)
        bytes_accessed = (2 * E_P * 4 + N * C * cdt_bytes + weight_bytes
                          + E_P * OUT * out_bytes)
        per_step = 2 * (2 * tile * 4 + tile * OUT * out_bytes)   # double-buffered
        resident = 2 * (N * C * cdt_bytes + weight_bytes)
        interm = 2 * tile * N * cdt_bytes + 2 * tile * C * 4 + tile * OUT * 4
    else:
        # TODO(synk): for very large N, do a true in-kernel dynamic/DMA row
        # gather instead of materializing the two [E, C] halves with XLA.
        z_c = z.astype(compute_dtype)
        xr = z_c[row]                                  # [E_P, C]
        xc = z_c[col]                                  # [E_P, C]
        kernel = _pregathered_linear_kernel
        operands = (xr, xc, w_top, w_bot, bias2d)
        in_specs = [
            pl.BlockSpec((tile, C), lambda i: (i, 0)),   # z[row] tile
            pl.BlockSpec((tile, C), lambda i: (i, 0)),   # z[col] tile
            pl.BlockSpec((C, OUT), lambda i: (0, 0)),    # W_top
            pl.BlockSpec((C, OUT), lambda i: (0, 0)),    # W_bot
            pl.BlockSpec((1, OUT), lambda i: (0, 0)),    # bias
        ]
        flops = E_P * 4 * C * OUT
        bytes_accessed = (2 * E_P * C * cdt_bytes + weight_bytes
                          + E_P * OUT * out_bytes)
        per_step = 2 * (2 * tile * C * cdt_bytes + tile * OUT * out_bytes)
        resident = 2 * weight_bytes
        interm = 2 * tile * C * 4 + tile * OUT * 4

    # Explicit VMEM budget: floor at the 32 MiB v6e/v7x default, cap below
    # v7x's 64 MiB/TC physical VMEM (harmless on v5e/v6e with 128 MiB).
    vmem_limit = max(32 * _MIB, int((per_step + resident + interm) * 1.5))
    vmem_limit = min(vmem_limit, 56 * _MIB)

    out = pl.pallas_call(
        kernel,
        out_shape=jax.ShapeDtypeStruct((E_P, OUT), out_dtype),
        grid_spec=pltpu.PrefetchScalarGridSpec(
            num_scalar_prefetch=0,
            grid=grid,
            in_specs=in_specs,
            # OUT is the full array dim (never padded in HBM): lane-dense
            # stores when OUT % 128 == 0, masked stores otherwise, but no
            # inflated writeback for small OUT.
            out_specs=pl.BlockSpec((tile, OUT), lambda i: (i, 0)),
        ),
        compiler_params=pltpu.CompilerParams(
            dimension_semantics=("parallel",),   # megacore split on v7x
            vmem_limit_bytes=vmem_limit,
        ),
        cost_estimate=pl.CostEstimate(
            flops=int(flops), transcendentals=0,
            bytes_accessed=int(bytes_accessed)),
    )(*operands)

    if E_P != E:
        out = out[:E]   # row padding only; consumers may also keep the padded layout
    return out


def init_params(key, in_channels, out_channels):
    """Deterministic init mimicking nn.Linear(in_channels*2, out_channels)."""
    fan_in = in_channels * 2
    bound = 1.0 / jnp.sqrt(jnp.float32(fan_in))
    k_w, k_b = jax.random.split(key)
    # PyTorch stores weight as [out, in]; we keep the transposed layout [in, out].
    weight_t = jax.random.uniform(
        k_w, (fan_in, out_channels), jnp.float32, -bound, bound
    )
    bias = jax.random.uniform(k_b, (out_channels,), jnp.float32, -bound, bound)
    return weight_t, bias


if __name__ == "__main__":
    key = jax.random.PRNGKey(0)
    k_z, k_e, k_p = jax.random.split(key, 3)

    N = 32           # number of nodes
    IN_CH = 64       # in_channels -> concat feature dim 2*C = 128
    OUT_CH = 128     # out_channels (lane-dense output)
    E = 200          # number of edges (NOT a tile multiple -> exercises padding)

    z = jax.random.normal(k_z, (N, IN_CH), jnp.float32)
    edge_index = jax.random.randint(k_e, (2, E), 0, N, jnp.int32)
    weight_t, bias = init_params(k_p, IN_CH, OUT_CH)

    # Pure-JAX f32 reference (same math as the PyTorch module).
    row_h, col_h = edge_index[0], edge_index[1]
    ref = jnp.concatenate([z[row_h], z[col_h]], axis=1) @ weight_t + bias

    # Fused-gather path (z VMEM-resident, gather done in-kernel).
    out = mlp_predictor_forward(z, edge_index, weight_t, bias)
    out = jax.block_until_ready(out)
    assert out.shape == (E, OUT_CH), out.shape
    err = float(jnp.max(jnp.abs(out.astype(jnp.float32) - ref)))
    assert jnp.allclose(out.astype(jnp.float32), ref, atol=3e-2, rtol=3e-2), err

    # Fallback path (pre-gathered halves) also exercised once.
    out_fb = mlp_predictor_forward(z, edge_index, weight_t, bias,
                                   fuse_gather_max_nodes=0)
    out_fb = jax.block_until_ready(out_fb)
    err_fb = float(jnp.max(jnp.abs(out_fb.astype(jnp.float32) - ref)))
    assert jnp.allclose(out_fb.astype(jnp.float32), ref,
                        atol=3e-2, rtol=3e-2), err_fb

    print("KERNEL_OK")
</pallas_src>

<mosaic_0001>
module attributes {stable_mosaic.version = 11 : i64} {
  func.func @_fused_gather_linear_kernel(%arg0: i32, %arg1: memref<256x1xi32, #tpu.memory_space<vmem>>, %arg2: memref<256x1xi32, #tpu.memory_space<vmem>>, %arg3: memref<32x64xbf16, #tpu.memory_space<vmem>>, %arg4: memref<64x128xbf16, #tpu.memory_space<vmem>>, %arg5: memref<64x128xbf16, #tpu.memory_space<vmem>>, %arg6: memref<1x128xf32, #tpu.memory_space<vmem>>, %arg7: memref<256x128xbf16, #tpu.memory_space<vmem>>) attributes {dimension_semantics = [#tpu.dimension_semantics<parallel>], iteration_bounds = array<i64: 1>, scalar_prefetch = 0 : i64, scratch_operands = 0 : i64, tpu.core_type = #tpu.core_type<tc>, window_params = [{transform_indices = @transform_0, window_bounds = array<i64: 256, 1>}, {transform_indices = @transform_1, window_bounds = array<i64: 256, 1>}, {pipeline_mode = #tpu.pipeline_mode<synchronous>, transform_indices = @transform_2, window_bounds = array<i64: 32, 64>}, {pipeline_mode = #tpu.pipeline_mode<synchronous>, transform_indices = @transform_3, window_bounds = array<i64: 64, 128>}, {pipeline_mode = #tpu.pipeline_mode<synchronous>, transform_indices = @transform_4, window_bounds = array<i64: 64, 128>}, {pipeline_mode = #tpu.pipeline_mode<synchronous>, transform_indices = @transform_5, window_bounds = array<i64: 1, 128>}, {transform_indices = @transform_6, window_bounds = array<i64: 256, 128>}]} {
    %0 = tpu.iota {dimensions = array<i32: 1>} : vector<256x32xi32>
    %c0 = arith.constant 0 : index
    %c0_0 = arith.constant 0 : index
    %1 = vector.load %arg1[%c0, %c0_0] : memref<256x1xi32, #tpu.memory_space<vmem>>, vector<256x1xi32>
    %2 = vector.broadcast %1 : vector<256x1xi32> to vector<256x32xi32>
    %3 = arith.cmpi eq, %2, %0 : vector<256x32xi32>
    %4 = arith.extui %3 : vector<256x32xi1> to vector<256x32xi32>
    %5 = arith.sitofp %4 : vector<256x32xi32> to vector<256x32xf32>
    %6 = arith.truncf %5 : vector<256x32xf32> to vector<256x32xbf16>
    %c0_1 = arith.constant 0 : index
    %c0_2 = arith.constant 0 : index
    %7 = vector.load %arg2[%c0_1, %c0_2] : memref<256x1xi32, #tpu.memory_space<vmem>>, vector<256x1xi32>
    %8 = vector.broadcast %7 : vector<256x1xi32> to vector<256x32xi32>
    %9 = arith.cmpi eq, %8, %0 : vector<256x32xi32>
    %10 = arith.extui %9 : vector<256x32xi1> to vector<256x32xi32>
    %11 = arith.sitofp %10 : vector<256x32xi32> to vector<256x32xf32>
    %12 = arith.truncf %11 : vector<256x32xf32> to vector<256x32xbf16>
    %c0_3 = arith.constant 0 : index
    %c0_4 = arith.constant 0 : index
    %13 = vector.load %arg3[%c0_3, %c0_4] : memref<32x64xbf16, #tpu.memory_space<vmem>>, vector<32x64xbf16>
    %cst = arith.constant dense<0.000000e+00> : vector<256x64xf32>
    %14 = tpu.matmul %6, %13, %cst {dimension_numbers = #tpu.dot_dimension_numbers<[1], [0], [0], [1], [0, 0, 1, 1], [], []>} : vector<256x32xbf16>, vector<32x64xbf16>, vector<256x64xf32> -> vector<256x64xf32>
    %15 = arith.truncf %14 : vector<256x64xf32> to vector<256x64xbf16>
    %c0_5 = arith.constant 0 : index
    %c0_6 = arith.constant 0 : index
    %16 = vector.load %arg3[%c0_5, %c0_6] : memref<32x64xbf16, #tpu.memory_space<vmem>>, vector<32x64xbf16>
    %cst_7 = arith.constant dense<0.000000e+00> : vector<256x64xf32>
    %17 = tpu.matmul %12, %16, %cst_7 {dimension_numbers = #tpu.dot_dimension_numbers<[1], [0], [0], [1], [0, 0, 1, 1], [], []>} : vector<256x32xbf16>, vector<32x64xbf16>, vector<256x64xf32> -> vector<256x64xf32>
    %18 = arith.truncf %17 : vector<256x64xf32> to vector<256x64xbf16>
    %c0_8 = arith.constant 0 : index
    %c0_9 = arith.constant 0 : index
    %19 = vector.load %arg4[%c0_8, %c0_9] : memref<64x128xbf16, #tpu.memory_space<vmem>>, vector<64x128xbf16>
    %cst_10 = arith.constant dense<0.000000e+00> : vector<256x128xf32>
    %20 = tpu.matmul %15, %19, %cst_10 {dimension_numbers = #tpu.dot_dimension_numbers<[1], [0], [0], [1], [0, 0, 1, 1], [], []>} : vector<256x64xbf16>, vector<64x128xbf16>, vector<256x128xf32> -> vector<256x128xf32>
    %c0_11 = arith.constant 0 : index
    %c0_12 = arith.constant 0 : index
    %21 = vector.load %arg5[%c0_11, %c0_12] : memref<64x128xbf16, #tpu.memory_space<vmem>>, vector<64x128xbf16>
    %cst_13 = arith.constant dense<0.000000e+00> : vector<256x128xf32>
    %22 = tpu.matmul %18, %21, %cst_13 {dimension_numbers = #tpu.dot_dimension_numbers<[1], [0], [0], [1], [0, 0, 1, 1], [], []>} : vector<256x64xbf16>, vector<64x128xbf16>, vector<256x128xf32> -> vector<256x128xf32>
    %23 = arith.addf %20, %22 : vector<256x128xf32>
    %c0_14 = arith.constant 0 : index
    %c0_15 = arith.constant 0 : index
    %24 = vector.load %arg6[%c0_14, %c0_15] : memref<1x128xf32, #tpu.memory_space<vmem>>, vector<1x128xf32>
    %25 = vector.broadcast %24 : vector<1x128xf32> to vector<256x128xf32>
    %26 = arith.addf %23, %25 : vector<256x128xf32>
    %27 = arith.truncf %26 : vector<256x128xf32> to vector<256x128xbf16>
    %c0_16 = arith.constant 0 : index
    %c0_17 = arith.constant 0 : index
    %28 = vector.load %arg7[%c0_16, %c0_17] : memref<256x128xbf16, #tpu.memory_space<vmem>>, vector<256x128xbf16>
    tpu.vector_store %arg7[%c0_16, %c0_17], %27 {strides = array<i32>} : memref<256x128xbf16, #tpu.memory_space<vmem>>, vector<256x128xbf16>,
    return
  }
  func.func @transform_0(%arg0: i32) -> (i32, i32) {
    %c0_i32 = arith.constant 0 : i32
    %c0_i32_0 = arith.constant 0 : i32
    return %arg0, %c0_i32 : i32, i32
  }
  func.func @transform_1(%arg0: i32) -> (i32, i32) {
    %c0_i32 = arith.constant 0 : i32
    %c0_i32_0 = arith.constant 0 : i32
    return %arg0, %c0_i32 : i32, i32
  }
  func.func @transform_2(%arg0: i32) -> (i32, i32) {
    %c0_i32 = arith.constant 0 : i32
    %c0_i32_0 = arith.constant 0 : i32
    %c0_i32_1 = arith.constant 0 : i32
    return %c0_i32, %c0_i32_0 : i32, i32
  }
  func.func @transform_3(%arg0: i32) -> (i32, i32) {
    %c0_i32 = arith.constant 0 : i32
    %c0_i32_0 = arith.constant 0 : i32
    %c0_i32_1 = arith.constant 0 : i32
    return %c0_i32, %c0_i32_0 : i32, i32
  }
  func.func @transform_4(%arg0: i32) -> (i32, i32) {
    %c0_i32 = arith.constant 0 : i32
    %c0_i32_0 = arith.constant 0 : i32
    %c0_i32_1 = arith.constant 0 : i32
    return %c0_i32, %c0_i32_0 : i32, i32
  }
  func.func @transform_5(%arg0: i32) -> (i32, i32) {
    %c0_i32 = arith.constant 0 : i32
    %c0_i32_0 = arith.constant 0 : i32
    %c0_i32_1 = arith.constant 0 : i32
    return %c0_i32, %c0_i32_0 : i32, i32
  }
  func.func @transform_6(%arg0: i32) -> (i32, i32) {
    %c0_i32 = arith.constant 0 : i32
    %c0_i32_0 = arith.constant 0 : i32
    return %arg0, %c0_i32 : i32, i32
  }
}

</mosaic_0001>

<llo_original>
// kernel: mlp_predictor_forward.1
$region0: #{mlp_predictor_forward.1}
  #allocation0 [shape = 'u32[]', space=smem, size = 0x4, offset = 0x4, fixed_abs, tag = 'smem constant byte address 0x4 - core index']
  #allocation1 [shape = 'u32[144,128]{1,0:T(1,128)}', space=vmem, size = 0x12000, scoped, tag = 'internal scratch']
  %s0 = inlined_call_operand.vmem [shape: s32[256,1], index: 0, kind: input, shape index: {}]
  %s1 = inlined_call_operand.vmem [shape: s32[256,1], index: 1, kind: input, shape index: {}]
  %s2 = inlined_call_operand.vmem [shape: bf16[32,64], index: 2, kind: input, shape index: {}]
  %s3 = inlined_call_operand.vmem [shape: bf16[64,128], index: 3, kind: input, shape index: {}]
  %s4 = inlined_call_operand.vmem [shape: bf16[64,128], index: 4, kind: input, shape index: {}]
  %s5 = inlined_call_operand.vmem [shape: f32[1,128], index: 5, kind: input, shape index: {}]
  %s6 = inlined_call_operand.vmem [shape: bf16[256,128], index: 6, kind: output, shape index: {}]
  %s7 = sld [smem:[#allocation0]]
  $region34: #{mlp_predictor_forward.1} parent=0
    _
  %s9 = ssub.s32 1, %s7
  %s10 = scalar_select 0, %s9, %s7
  // Predicated region
  $region2: #{mlp_predictor_forward.1} parent=0 // pred_check
    _
  $region3: #{mlp_predictor_forward.1} parent=0 // pred_check_branch
    %12 = sbr.rel (0) target = $region5
  $region4: #{mlp_predictor_forward.1} parent=0 // pred_region
    _
  $region5: #{mlp_predictor_forward.1} parent=0 // pred_fallthru
    _
  // Predicated region
  $region6: #{mlp_predictor_forward.1} parent=0 // pred_check
    _
  $region7: #{mlp_predictor_forward.1} parent=0 // pred_check_branch
    %14 = sbr.rel (0) target = $region9
  $region8: #{mlp_predictor_forward.1} parent=0 // pred_region
    _
  $region9: #{mlp_predictor_forward.1} parent=0 // pred_fallthru
    _
  // Predicated region
  $region10: #{mlp_predictor_forward.1} parent=0 // pred_check
    _
  $region11: #{mlp_predictor_forward.1} parent=0 // pred_check_branch
    %16 = sbr.rel (0) target = $region13
  $region12: #{mlp_predictor_forward.1} parent=0 // pred_region
    _
  $region13: #{mlp_predictor_forward.1} parent=0 // pred_fallthru
    _
  // Predicated region
  $region14: #{mlp_predictor_forward.1} parent=0 // pred_check
    _
  $region15: #{mlp_predictor_forward.1} parent=0 // pred_check_branch
    %18 = sbr.rel (0) target = $region17
  $region16: #{mlp_predictor_forward.1} parent=0 // pred_region
    _
  $region17: #{mlp_predictor_forward.1} parent=0 // pred_fallthru
    _
  // Predicated region
  $region18: #{mlp_predictor_forward.1} parent=0 // pred_check
    _
  $region19: #{mlp_predictor_forward.1} parent=0 // pred_check_branch
    %20 = sbr.rel (0) target = $region21
  $region20: #{mlp_predictor_forward.1} parent=0 // pred_region
    _
  $region21: #{mlp_predictor_forward.1} parent=0 // pred_fallthru
    _
  // Predicated region
  $region22: #{mlp_predictor_forward.1} parent=0 // pred_check
    _
  $region23: #{mlp_predictor_forward.1} parent=0 // pred_check_branch
    %22 = sbr.rel (0) target = $region25
  $region24: #{mlp_predictor_forward.1} parent=0 // pred_region
    _
  $region25: #{mlp_predictor_forward.1} parent=0 // pred_fallthru
    _
  %v24 = vlaneseq
  %v25 = vand.u32 %v24, 127
  %v26 = vld [vmem:[%s0] sm:$0xff]
  %v27 = vld [vmem:[%s0 + $0x8] sm:$0xff]
  %v28 = vld [vmem:[%s0 + $0x10] sm:$0xff]
  %v29 = vld [vmem:[%s0 + $0x18] sm:$0xff]
  %v30 = vld [vmem:[%s0 + $0x20] sm:$0xff]
  %v31 = vld [vmem:[%s0 + $0x28] sm:$0xff]
  %v32 = vld [vmem:[%s0 + $0x30] sm:$0xff]
  %v33 = vld [vmem:[%s0 + $0x38] sm:$0xff]
  %v34 = vld [vmem:[%s0 + $0x40] sm:$0xff]
  %v35 = vld [vmem:[%s0 + $0x48] sm:$0xff]
  %v36 = vld [vmem:[%s0 + $0x50] sm:$0xff]
  %v37 = vld [vmem:[%s0 + $0x58] sm:$0xff]
  %v38 = vld [vmem:[%s0 + $0x60] sm:$0xff]
  %v39 = vld [vmem:[%s0 + $0x68] sm:$0xff]
  %v40 = vld [vmem:[%s0 + $0x70] sm:$0xff]
  %v41 = vld [vmem:[%s0 + $0x78] sm:$0xff]
  %v42 = vld [vmem:[%s0 + $0x80] sm:$0xff]
  %v43 = vld [vmem:[%s0 + $0x88] sm:$0xff]
  %v44 = vld [vmem:[%s0 + $0x90] sm:$0xff]
  %v45 = vld [vmem:[%s0 + $0x98] sm:$0xff]
  %v46 = vld [vmem:[%s0 + $0xa0] sm:$0xff]
  %v47 = vld [vmem:[%s0 + $0xa8] sm:$0xff]
  %v48 = vld [vmem:[%s0 + $0xb0] sm:$0xff]
  %v49 = vld [vmem:[%s0 + $0xb8] sm:$0xff]
  %v50 = vld [vmem:[%s0 + $0xc0] sm:$0xff]
  %v51 = vld [vmem:[%s0 + $0xc8] sm:$0xff]
  %v52 = vld [vmem:[%s0 + $0xd0] sm:$0xff]
  %v53 = vld [vmem:[%s0 + $0xd8] sm:$0xff]
  %v54 = vld [vmem:[%s0 + $0xe0] sm:$0xff]
  %v55 = vld [vmem:[%s0 + $0xe8] sm:$0xff]
  %v56 = vld [vmem:[%s0 + $0xf0] sm:$0xff]
  %v57 = vld [vmem:[%s0 + $0xf8] sm:$0xff]
  %58 = vset.pattern.permute.xlu0 0
  %59 = vperm.xlu0 %58, %v26
  %v60 = vpop.permute.xlu0 %59
  %61 = vset.pattern.permute.xlu0 0
  %62 = vperm.xlu0 %61, %v27
  %v63 = vpop.permute.xlu0 %62
  %64 = vset.pattern.permute.xlu0 0
  %65 = vperm.xlu0 %64, %v28
  %v66 = vpop.permute.xlu0 %65
  %67 = vset.pattern.permute.xlu0 0
  %68 = vperm.xlu0 %67, %v29
  %v69 = vpop.permute.xlu0 %68
  %70 = vset.pattern.permute.xlu0 0
  %71 = vperm.xlu0 %70, %v30
  %v72 = vpop.permute.xlu0 %71
  %73 = vset.pattern.permute.xlu0 0
  %74 = vperm.xlu0 %73, %v31
  %v75 = vpop.permute.xlu0 %74
  %76 = vset.pattern.permute.xlu0 0
  %77 = vperm.xlu0 %76, %v32
  %v78 = vpop.permute.xlu0 %77
  %79 = vset.pattern.permute.xlu0 0
  %80 = vperm.xlu0 %79, %v33
  %v81 = vpop.permute.xlu0 %80
  %82 = vset.pattern.permute.xlu0 0
  %83 = vperm.xlu0 %82, %v34
  %v84 = vpop.permute.xlu0 %83
  %85 = vset.pattern.permute.xlu0 0
  %86 = vperm.xlu0 %85, %v35
  %v87 = vpop.permute.xlu0 %86
  %88 = vset.pattern.permute.xlu0 0
  %89 = vperm.xlu0 %88, %v36
  %v90 = vpop.permute.xlu0 %89
  %91 = vset.pattern.permute.xlu0 0
  %92 = vperm.xlu0 %91, %v37
  %v93 = vpop.permute.xlu0 %92
  %94 = vset.pattern.permute.xlu0 0
  %95 = vperm.xlu0 %94, %v38
  %v96 = vpop.permute.xlu0 %95
  %97 = vset.pattern.permute.xlu0 0
  %98 = vperm.xlu0 %97, %v39
  %v99 = vpop.permute.xlu0 %98
  %100 = vset.pattern.permute.xlu0 0
  %101 = vperm.xlu0 %100, %v40
  %v102 = vpop.permute.xlu0 %101
  %103 = vset.pattern.permute.xlu0 0
  %104 = vperm.xlu0 %103, %v41
  %v105 = vpop.permute.xlu0 %104
  %106 = vset.pattern.permute.xlu0 0
  %107 = vperm.xlu0 %106, %v42
  %v108 = vpop.permute.xlu0 %107
  %109 = vset.pattern.permute.xlu0 0
  %110 = vperm.xlu0 %109, %v43
  %v111 = vpop.permute.xlu0 %110
  %112 = vset.pattern.permute.xlu0 0
  %113 = vperm.xlu0 %112, %v44
  %v114 = vpop.permute.xlu0 %113
  %115 = vset.pattern.permute.xlu0 0
  %116 = vperm.xlu0 %115, %v45
  %v117 = vpop.permute.xlu0 %116
  %118 = vset.pattern.permute.xlu0 0
  %119 = vperm.xlu0 %118, %v46
  %v120 = vpop.permute.xlu0 %119
  %121 = vset.pattern.permute.xlu0 0
  %122 = vperm.xlu0 %121, %v47
  %v123 = vpop.permute.xlu0 %122
  %124 = vset.pattern.permute.xlu0 0
  %125 = vperm.xlu0 %124, %v48
  %v126 = vpop.permute.xlu0 %125
  %127 = vset.pattern.permute.xlu0 0
  %128 = vperm.xlu0 %127, %v49
  %v129 = vpop.permute.xlu0 %128
  %130 = vset.pattern.permute.xlu0 0
  %131 = vperm.xlu0 %130, %v50
  %v132 = vpop.permute.xlu0 %131
  %133 = vset.pattern.permute.xlu0 0
  %134 = vperm.xlu0 %133, %v51
  %v135 = vpop.permute.xlu0 %134
  %136 = vset.pattern.permute.xlu0 0
  %137 = vperm.xlu0 %136, %v52
  %v138 = vpop.permute.xlu0 %137
  %139 = vset.pattern.permute.xlu0 0
  %140 = vperm.xlu0 %139, %v53
  %v141 = vpop.permute.xlu0 %140
  %142 = vset.pattern.permute.xlu0 0
  %143 = vperm.xlu0 %142, %v54
  %v144 = vpop.permute.xlu0 %143
  %145 = vset.pattern.permute.xlu0 0
  %146 = vperm.xlu0 %145, %v55
  %v147 = vpop.permute.xlu0 %146
  %148 = vset.pattern.permute.xlu0 0
  %149 = vperm.xlu0 %148, %v56
  %v150 = vpop.permute.xlu0 %149
  %151 = vset.pattern.permute.xlu0 0
  %152 = vperm.xlu0 %151, %v57
  %v153 = vpop.permute.xlu0 %152
  %vm154 = vcmp.eq.s32.totalorder %v60, %v25
  %vm155 = vcmp.eq.s32.totalorder %v63, %v25
  %vm156 = vcmp.eq.s32.totalorder %v66, %v25
  %vm157 = vcmp.eq.s32.totalorder %v69, %v25
  %vm158 = vcmp.eq.s32.totalorder %v72, %v25
  %vm159 = vcmp.eq.s32.totalorder %v75, %v25
  %vm160 = vcmp.eq.s32.totalorder %v78, %v25
  %vm161 = vcmp.eq.s32.totalorder %v81, %v25
  %vm162 = vcmp.eq.s32.totalorder %v84, %v25
  %vm163 = vcmp.eq.s32.totalorder %v87, %v25
  %vm164 = vcmp.eq.s32.totalorder %v90, %v25
  %vm165 = vcmp.eq.s32.totalorder %v93, %v25
  %vm166 = vcmp.eq.s32.totalorder %v96, %v25
  %vm167 = vcmp.eq.s32.totalorder %v99, %v25
  %vm168 = vcmp.eq.s32.totalorder %v102, %v25
  %vm169 = vcmp.eq.s32.totalorder %v105, %v25
  %vm170 = vcmp.eq.s32.totalorder %v108, %v25
  %vm171 = vcmp.eq.s32.totalorder %v111, %v25
  %vm172 = vcmp.eq.s32.totalorder %v114, %v25
  %vm173 = vcmp.eq.s32.totalorder %v117, %v25
  %vm174 = vcmp.eq.s32.totalorder %v120, %v25
  %vm175 = vcmp.eq.s32.totalorder %v123, %v25
  %vm176 = vcmp.eq.s32.totalorder %v126, %v25
  %vm177 = vcmp.eq.s32.totalorder %v129, %v25
  %vm178 = vcmp.eq.s32.totalorder %v132, %v25
  %vm179 = vcmp.eq.s32.totalorder %v135, %v25
  %vm180 = vcmp.eq.s32.totalorder %v138, %v25
  %vm181 = vcmp.eq.s32.totalorder %v141, %v25
  %vm182 = vcmp.eq.s32.totalorder %v144, %v25
  %vm183 = vcmp.eq.s32.totalorder %v147, %v25
  %vm184 = vcmp.eq.s32.totalorder %v150, %v25
  %vm185 = vcmp.eq.s32.totalorder %v153, %v25
  %v186 = vsel %vm154, 1, 0
  %v187 = vsel %vm155, 1, 0
  %v188 = vsel %vm156, 1, 0
  %v189 = vsel %vm157, 1, 0
  %v190 = vsel %vm158, 1, 0
  %v191 = vsel %vm159, 1, 0
  %v192 = vsel %vm160, 1, 0
  %v193 = vsel %vm161, 1, 0
  %v194 = vsel %vm162, 1, 0
  %v195 = vsel %vm163, 1, 0
  %v196 = vsel %vm164, 1, 0
  %v197 = vsel %vm165, 1, 0
  %v198 = vsel %vm166, 1, 0
  %v199 = vsel %vm167, 1, 0
  %v200 = vsel %vm168, 1, 0
  %v201 = vsel %vm169, 1, 0
  %v202 = vsel %vm170, 1, 0
  %v203 = vsel %vm171, 1, 0
  %v204 = vsel %vm172, 1, 0
  %v205 = vsel %vm173, 1, 0
  %v206 = vsel %vm174, 1, 0
  %v207 = vsel %vm175, 1, 0
  %v208 = vsel %vm176, 1, 0
  %v209 = vsel %vm177, 1, 0
  %v210 = vsel %vm178, 1, 0
  %v211 = vsel %vm179, 1, 0
  %v212 = vsel %vm180, 1, 0
  %v213 = vsel %vm181, 1, 0
  %v214 = vsel %vm182, 1, 0
  %v215 = vsel %vm183, 1, 0
  %v216 = vsel %vm184, 1, 0
  %v217 = vsel %vm185, 1, 0
  %v218 = vcvt.s32.f32 %v186
  %v219 = vcvt.s32.f32 %v187
  %v220 = vcvt.s32.f32 %v188
  %v221 = vcvt.s32.f32 %v189
  %v222 = vcvt.s32.f32 %v190
  %v223 = vcvt.s32.f32 %v191
  %v224 = vcvt.s32.f32 %v192
  %v225 = vcvt.s32.f32 %v193
  %v226 = vcvt.s32.f32 %v194
  %v227 = vcvt.s32.f32 %v195
  %v228 = vcvt.s32.f32 %v196
  %v229 = vcvt.s32.f32 %v197
  %v230 = vcvt.s32.f32 %v198
  %v231 = vcvt.s32.f32 %v199
  %v232 = vcvt.s32.f32 %v200
  %v233 = vcvt.s32.f32 %v201
  %v234 = vcvt.s32.f32 %v202
  %v235 = vcvt.s32.f32 %v203
  %v236 = vcvt.s32.f32 %v204
  %v237 = vcvt.s32.f32 %v205
  %v238 = vcvt.s32.f32 %v206
  %v239 = vcvt.s32.f32 %v207
  %v240 = vcvt.s32.f32 %v208
  %v241 = vcvt.s32.f32 %v209
  %v242 = vcvt.s32.f32 %v210
  %v243 = vcvt.s32.f32 %v211
  %v244 = vcvt.s32.f32 %v212
  %v245 = vcvt.s32.f32 %v213
  %v246 = vcvt.s32.f32 %v214
  %v247 = vcvt.s32.f32 %v215
  %v248 = vcvt.s32.f32 %v216
  %v249 = vcvt.s32.f32 %v217
  %v250 = vpack.c.bf16 %v219, %v218
  %v251 = vpack.c.bf16 %v221, %v220
  %v252 = vpack.c.bf16 %v223, %v222
  %v253 = vpack.c.bf16 %v225, %v224
  %v254 = vpack.c.bf16 %v227, %v226
  %v255 = vpack.c.bf16 %v229, %v228
  %v256 = vpack.c.bf16 %v231, %v230
  %v257 = vpack.c.bf16 %v233, %v232
  %v258 = vpack.c.bf16 %v235, %v234
  %v259 = vpack.c.bf16 %v237, %v236
  %v260 = vpack.c.bf16 %v239, %v238
  %v261 = vpack.c.bf16 %v241, %v240
  %v262 = vpack.c.bf16 %v243, %v242
  %v263 = vpack.c.bf16 %v245, %v244
  %v264 = vpack.c.bf16 %v247, %v246
  %v265 = vpack.c.bf16 %v249, %v248
  %v266 = vld [vmem:[%s1] sm:$0xff]
  %v267 = vld [vmem:[%s1 + $0x8] sm:$0xff]
  %v268 = vld [vmem:[%s1 + $0x10] sm:$0xff]
  %v269 = vld [vmem:[%s1 + $0x18] sm:$0xff]
  %v270 = vld [vmem:[%s1 + $0x20] sm:$0xff]
  %v271 = vld [vmem:[%s1 + $0x28] sm:$0xff]
  %v272 = vld [vmem:[%s1 + $0x30] sm:$0xff]
  %v273 = vld [vmem:[%s1 + $0x38] sm:$0xff]
  %v274 = vld [vmem:[%s1 + $0x40] sm:$0xff]
  %v275 = vld [vmem:[%s1 + $0x48] sm:$0xff]
  %v276 = vld [vmem:[%s1 + $0x50] sm:$0xff]
  %v277 = vld [vmem:[%s1 + $0x58] sm:$0xff]
  %v278 = vld [vmem:[%s1 + $0x60] sm:$0xff]
  %v279 = vld [vmem:[%s1 + $0x68] sm:$0xff]
  %v280 = vld [vmem:[%s1 + $0x70] sm:$0xff]
  %v281 = vld [vmem:[%s1 + $0x78] sm:$0xff]
  %v282 = vld [vmem:[%s1 + $0x80] sm:$0xff]
  %v283 = vld [vmem:[%s1 + $0x88] sm:$0xff]
  %v284 = vld [vmem:[%s1 + $0x90] sm:$0xff]
  %v285 = vld [vmem:[%s1 + $0x98] sm:$0xff]
  %v286 = vld [vmem:[%s1 + $0xa0] sm:$0xff]
  %v287 = vld [vmem:[%s1 + $0xa8] sm:$0xff]
  %v288 = vld [vmem:[%s1 + $0xb0] sm:$0xff]
  %v289 = vld [vmem:[%s1 + $0xb8] sm:$0xff]
  %v290 = vld [vmem:[%s1 + $0xc0] sm:$0xff]
  %v291 = vld [vmem:[%s1 + $0xc8] sm:$0xff]
  %v292 = vld [vmem:[%s1 + $0xd0] sm:$0xff]
  %v293 = vld [vmem:[%s1 + $0xd8] sm:$0xff]
  %v294 = vld [vmem:[%s1 + $0xe0] sm:$0xff]
  %v295 = vld [vmem:[%s1 + $0xe8] sm:$0xff]
  %v296 = vld [vmem:[%s1 + $0xf0] sm:$0xff]
  %v297 = vld [vmem:[%s1 + $0xf8] sm:$0xff]
  %298 = vset.pattern.permute.xlu0 0
  %299 = vperm.xlu0 %298, %v266
  %v300 = vpop.permute.xlu0 %299
  %301 = vset.pattern.permute.xlu0 0
  %302 = vperm.xlu0 %301, %v267
  %v303 = vpop.permute.xlu0 %302
  %304 = vset.pattern.permute.xlu0 0
  %305 = vperm.xlu0 %304, %v268
  %v306 = vpop.permute.xlu0 %305
  %307 = vset.pattern.permute.xlu0 0
  %308 = vperm.xlu0 %307, %v269
  %v309 = vpop.permute.xlu0 %308
  %310 = vset.pattern.permute.xlu0 0
  %311 = vperm.xlu0 %310, %v270
  %v312 = vpop.permute.xlu0 %311
  %313 = vset.pattern.permute.xlu0 0
  %314 = vperm.xlu0 %313, %v271
  %v315 = vpop.permute.xlu0 %314
  %316 = vset.pattern.permute.xlu0 0
  %317 = vperm.xlu0 %316, %v272
  %v318 = vpop.permute.xlu0 %317
  %319 = vset.pattern.permute.xlu0 0
  %320 = vperm.xlu0 %319, %v273
  %v321 = vpop.permute.xlu0 %320
  %322 = vset.pattern.permute.xlu0 0
  %323 = vperm.xlu0 %322, %v274
  %v324 = vpop.permute.xlu0 %323
  %325 = vset.pattern.permute.xlu0 0
  %326 = vperm.xlu0 %325, %v275
  %v327 = vpop.permute.xlu0 %326
  %328 = vset.pattern.permute.xlu0 0
  %329 = vperm.xlu0 %328, %v276
  %v330 = vpop.permute.xlu0 %329
  %331 = vset.pattern.permute.xlu0 0
  %332 = vperm.xlu0 %331, %v277
  %v333 = vpop.permute.xlu0 %332
  %334 = vset.pattern.permute.xlu0 0
  %335 = vperm.xlu0 %334, %v278
  %v336 = vpop.permute.xlu0 %335
  %337 = vset.pattern.permute.xlu0 0
  %338 = vperm.xlu0 %337, %v279
  %v339 = vpop.permute.xlu0 %338
  %340 = vset.pattern.permute.xlu0 0
  %341 = vperm.xlu0 %340, %v280
  %v342 = vpop.permute.xlu0 %341
  %343 = vset.pattern.permute.xlu0 0
  %344 = vperm.xlu0 %343, %v281
  %v345 = vpop.permute.xlu0 %344
  %346 = vset.pattern.permute.xlu0 0
  %347 = vperm.xlu0 %346, %v282
  %v348 = vpop.permute.xlu0 %347
  %349 = vset.pattern.permute.xlu0 0
  %350 = vperm.xlu0 %349, %v283
  %v351 = vpop.permute.xlu0 %350
  %352 = vset.pattern.permute.xlu0 0
  %353 = vperm.xlu0 %352, %v284
  %v354 = vpop.permute.xlu0 %353
  %355 = vset.pattern.permute.xlu0 0
  %356 = vperm.xlu0 %355, %v285
  %v357 = vpop.permute.xlu0 %356
  %358 = vset.pattern.permute.xlu0 0
  %359 = vperm.xlu0 %358, %v286
  %v360 = vpop.permute.xlu0 %359
  %361 = vset.pattern.permute.xlu0 0
  %362 = vperm.xlu0 %361, %v287
  %v363 = vpop.permute.xlu0 %362
  %364 = vset.pattern.permute.xlu0 0
  %365 = vperm.xlu0 %364, %v288
  %v366 = vpop.permute.xlu0 %365
  %367 = vset.pattern.permute.xlu0 0
  %368 = vperm.xlu0 %367, %v289
  %v369 = vpop.permute.xlu0 %368
  %370 = vset.pattern.permute.xlu0 0
  %371 = vperm.xlu0 %370, %v290
  %v372 = vpop.permute.xlu0 %371
  %373 = vset.pattern.permute.xlu0 0
  %374 = vperm.xlu0 %373, %v291
  %v375 = vpop.permute.xlu0 %374
  %376 = vset.pattern.permute.xlu0 0
  %377 = vperm.xlu0 %376, %v292
  %v378 = vpop.permute.xlu0 %377
  %379 = vset.pattern.permute.xlu0 0
  %380 = vperm.xlu0 %379, %v293
  %v381 = vpop.permute.xlu0 %380
  %382 = vset.pattern.permute.xlu0 0
  %383 = vperm.xlu0 %382, %v294
  %v384 = vpop.permute.xlu0 %383
  %385 = vset.pattern.permute.xlu0 0
  %386 = vperm.xlu0 %385, %v295
  %v387 = vpop.permute.xlu0 %386
  %388 = vset.pattern.permute.xlu0 0
  %389 = vperm.xlu0 %388, %v296
  %v390 = vpop.permute.xlu0 %389
  %391 = vset.pattern.permute.xlu0 0
  %392 = vperm.xlu0 %391, %v297
  %v393 = vpop.permute.xlu0 %392
  %vm394 = vcmp.eq.s32.totalorder %v300, %v25
  %vm395 = vcmp.eq.s32.totalorder %v303, %v25
  %vm396 = vcmp.eq.s32.totalorder %v306, %v25
  %vm397 = vcmp.eq.s32.totalorder %v309, %v25
  %vm398 = vcmp.eq.s32.totalorder %v312, %v25
  %vm399 = vcmp.eq.s32.totalorder %v315, %v25
  %vm400 = vcmp.eq.s32.totalorder %v318, %v25
  %vm401 = vcmp.eq.s32.totalorder %v321, %v25
  %vm402 = vcmp.eq.s32.totalorder %v324, %v25
  %vm403 = vcmp.eq.s32.totalorder %v327, %v25
  %vm404 = vcmp.eq.s32.totalorder %v330, %v25
  %vm405 = vcmp.eq.s32.totalorder %v333, %v25
  %vm406 = vcmp.eq.s32.totalorder %v336, %v25
  %vm407 = vcmp.eq.s32.totalorder %v339, %v25
  %vm408 = vcmp.eq.s32.totalorder %v342, %v25
  %vm409 = vcmp.eq.s32.totalorder %v345, %v25
  %vm410 = vcmp.eq.s32.totalorder %v348, %v25
  %vm411 = vcmp.eq.s32.totalorder %v351, %v25
  %vm412 = vcmp.eq.s32.totalorder %v354, %v25
  %vm413 = vcmp.eq.s32.totalorder %v357, %v25
  %vm414 = vcmp.eq.s32.totalorder %v360, %v25
  %vm415 = vcmp.eq.s32.totalorder %v363, %v25
  %vm416 = vcmp.eq.s32.totalorder %v366, %v25
  %vm417 = vcmp.eq.s32.totalorder %v369, %v25
  %vm418 = vcmp.eq.s32.totalorder %v372, %v25
  %vm419 = vcmp.eq.s32.totalorder %v375, %v25
  %vm420 = vcmp.eq.s32.totalorder %v378, %v25
  %vm421 = vcmp.eq.s32.totalorder %v381, %v25
  %vm422 = vcmp.eq.s32.totalorder %v384, %v25
  %vm423 = vcmp.eq.s32.totalorder %v387, %v25
  %vm424 = vcmp.eq.s32.totalorder %v390, %v25
  %vm425 = vcmp.eq.s32.totalorder %v393, %v25
  %v426 = vsel %vm394, 1, 0
  %v427 = vsel %vm395, 1, 0
  %v428 = vsel %vm396, 1, 0
  %v429 = vsel %vm397, 1, 0
  %v430 = vsel %vm398, 1, 0
  %v431 = vsel %vm399, 1, 0
  %v432 = vsel %vm400, 1, 0
  %v433 = vsel %vm401, 1, 0
  %v434 = vsel %vm402, 1, 0
  %v435 = vsel %vm403, 1, 0
  %v436 = vsel %vm404, 1, 0
  %v437 = vsel %vm405, 1, 0
  %v438 = vsel %vm406, 1, 0
  %v439 = vsel %vm407, 1, 0
  %v440 = vsel %vm408, 1, 0
  %v441 = vsel %vm409, 1, 0
  %v442 = vsel %vm410, 1, 0
  %v443 = vsel %vm411, 1, 0
  %v444 = vsel %vm412, 1, 0
  %v445 = vsel %vm413, 1, 0
  %v446 = vsel %vm414, 1, 0
  %v447 = vsel %vm415, 1, 0
  %v448 = vsel %vm416, 1, 0
  %v449 = vsel %vm417, 1, 0
  %v450 = vsel %vm418, 1, 0
  %v451 = vsel %vm419, 1, 0
  %v452 = vsel %vm420, 1, 0
  %v453 = vsel %vm421, 1, 0
  %v454 = vsel %vm422, 1, 0
  %v455 = vsel %vm423, 1, 0
  %v456 = vsel %vm424, 1, 0
  %v457 = vsel %vm425, 1, 0
  %v458 = vcvt.s32.f32 %v426
  %v459 = vcvt.s32.f32 %v427
  %v460 = vcvt.s32.f32 %v428
  %v461 = vcvt.s32.f32 %v429
  %v462 = vcvt.s32.f32 %v430
  %v463 = vcvt.s32.f32 %v431
  %v464 = vcvt.s32.f32 %v432
  %v465 = vcvt.s32.f32 %v433
  %v466 = vcvt.s32.f32 %v434
  %v467 = vcvt.s32.f32 %v435
  %v468 = vcvt.s32.f32 %v436
  %v469 = vcvt.s32.f32 %v437
  %v470 = vcvt.s32.f32 %v438
  %v471 = vcvt.s32.f32 %v439
  %v472 = vcvt.s32.f32 %v440
  %v473 = vcvt.s32.f32 %v441
  %v474 = vcvt.s32.f32 %v442
  %v475 = vcvt.s32.f32 %v443
  %v476 = vcvt.s32.f32 %v444
  %v477 = vcvt.s32.f32 %v445
  %v478 = vcvt.s32.f32 %v446
  %v479 = vcvt.s32.f32 %v447
  %v480 = vcvt.s32.f32 %v448
  %v481 = vcvt.s32.f32 %v449
  %v482 = vcvt.s32.f32 %v450
  %v483 = vcvt.s32.f32 %v451
  %v484 = vcvt.s32.f32 %v452
  %v485 = vcvt.s32.f32 %v453
  %v486 = vcvt.s32.f32 %v454
  %v487 = vcvt.s32.f32 %v455
  %v488 = vcvt.s32.f32 %v456
  %v489 = vcvt.s32.f32 %v457
  %v490 = vpack.c.bf16 %v459, %v458
  %v491 = vpack.c.bf16 %v461, %v460
  %v492 = vpack.c.bf16 %v463, %v462
  %v493 = vpack.c.bf16 %v465, %v464
  %v494 = vpack.c.bf16 %v467, %v466
  %v495 = vpack.c.bf16 %v469, %v468
  %v496 = vpack.c.bf16 %v471, %v470
  %v497 = vpack.c.bf16 %v473, %v472
  %v498 = vpack.c.bf16 %v475, %v474
  %v499 = vpack.c.bf16 %v477, %v476
  %v500 = vpack.c.bf16 %v479, %v478
  %v501 = vpack.c.bf16 %v481, %v480
  %v502 = vpack.c.bf16 %v483, %v482
  %v503 = vpack.c.bf16 %v485, %v484
  %v504 = vpack.c.bf16 %v487, %v486
  %v505 = vpack.c.bf16 %v489, %v488
  %v506 = vld [vmem:[%s2] sm:$0xf]
  %v507 = vld [vmem:[%s2 + $0x4] sm:$0xf]
  %v508 = vld [vmem:[%s2 + $0x8] sm:$0xf]
  %v509 = vld [vmem:[%s2 + $0xc] sm:$0xf]
  %v514 = vunpack.c.l.b16 %v506
  %v515 = vunpack.c.l.b16 %v507
  %v516 = vunpack.c.l.b16 %v508
  %v517 = vunpack.c.l.b16 %v509
  %v518 = vpack.c.b16 %v515, %v514
  %v519 = vpack.c.b16 %v517, %v516
  %vm522 = vcmask 261120
  %v524 = vsel %vm522, %v250, 0
  %v527 = vsel %vm522, %v251, 0
  %v530 = vsel %vm522, %v252, 0
  %v533 = vsel %vm522, %v253, 0
  %v536 = vsel %vm522, %v254, 0
  %v539 = vsel %vm522, %v255, 0
  %v542 = vsel %vm522, %v256, 0
  %v545 = vsel %vm522, %v257, 0
  %v548 = vsel %vm522, %v258, 0
  %v551 = vsel %vm522, %v259, 0
  %v554 = vsel %vm522, %v260, 0
  %v557 = vsel %vm522, %v261, 0
  %v560 = vsel %vm522, %v262, 0
  %v563 = vsel %vm522, %v263, 0
  %v566 = vsel %vm522, %v264, 0
  %v569 = vsel %vm522, %v265, 0
  %571 = vmatprep.subr.bf16.mxu0 0
  %572 = vmatpush1.bf16.msra.mxu0 %v518
  %573 = vmatprep.subr.bf16.mxu0 0
  %574 = vmatpush1.bf16.msra.mxu0 %v519
  %575 = vmatprep.subr.bf16.mxu0 0
  %576 = vmatpush1.bf16.msra.mxu0 0
  %577 = vmatprep.subr.bf16.mxu0 0
  %578 = vmatpush1.bf16.msra.mxu0 0
  %579 = vmatprep.subr.bf16.mxu0 0
  %580 = vmatpush1.bf16.msra.mxu0 0
  %581 = vmatprep.subr.bf16.mxu0 0
  %582 = vmatpush1.bf16.msra.mxu0 0
  %583 = vmatprep.subr.bf16.mxu0 0
  %584 = vmatpush1.bf16.msra.mxu0 0
  %585 = vmatprep.subr.bf16.mxu0 0
  %586 = vmatpush1.bf16.msra.mxu0 0
  %587 = vmatprep.subr.bf16.mxu0 0
  %588 = vmatpush1.bf16.msra.mxu0 0
  %589 = vmatprep.subr.bf16.mxu0 0
  %590 = vmatpush1.bf16.msra.mxu0 0
  %591 = vmatprep.subr.bf16.mxu0 0
  %592 = vmatpush1.bf16.msra.mxu0 0
  %593 = vmatprep.subr.bf16.mxu0 0
  %594 = vmatpush1.bf16.msra.mxu0 0
  %595 = vmatprep.subr.bf16.mxu0 0
  %596 = vmatpush1.bf16.msra.mxu0 0
  %597 = vmatprep.subr.bf16.mxu0 0
  %598 = vmatpush1.bf16.msra.mxu0 0
  %599 = vmatprep.subr.bf16.mxu0 0
  %600 = vmatpush1.bf16.msra.mxu0 0
  %601 = vmatprep.subr.bf16.mxu0 0
  %602 = vmatpush1.bf16.msra.mxu0 0
  %603 = vmatprep.mubr.bf16.mxu0 0
  %604 = vmatmul.mubr.bf16.gmra.mrb[0].mxu0 %v524
  %v605 = vpop.f32.mrb[0].mxu0
  %v606 = vadd.f32 0.0, %v605
  %v607 = vpop.f32.mrb[0].mxu0
  %v608 = vpop.f32.mrb[0].mxu0
  %v609 = vadd.f32 0.0, %v608
  %v610 = vpop.f32.mrb[0].mxu0
  %611 = vmatprep.mubr.bf16.mxu0 0
  %612 = vmatmul.mubr.bf16.gmra.mrb[0].mxu0 %v527
  %v613 = vpop.f32.mrb[0].mxu0
  %v614 = vadd.f32 0.0, %v613
  %v615 = vpop.f32.mrb[0].mxu0
  %v616 = vpop.f32.mrb[0].mxu0
  %v617 = vadd.f32 0.0, %v616
  %v618 = vpop.f32.mrb[0].mxu0
  %619 = vmatprep.mubr.bf16.mxu0 0
  %620 = vmatmul.mubr.bf16.gmra.mrb[0].mxu0 %v530
  %v621 = vpop.f32.mrb[0].mxu0
  %v622 = vadd.f32 0.0, %v621
  %v623 = vpop.f32.mrb[0].mxu0
  %v624 = vpop.f32.mrb[0].mxu0
  %v625 = vadd.f32 0.0, %v624
  %v626 = vpop.f32.mrb[0].mxu0
  %627 = vmatprep.mubr.bf16.mxu0 0
  %628 = vmatmul.mubr.bf16.gmra.mrb[0].mxu0 %v533
  %v629 = vpop.f32.mrb[0].mxu0
  %v630 = vadd.f32 0.0, %v629
  %v631 = vpop.f32.mrb[0].mxu0
  %v632 = vpop.f32.mrb[0].mxu0
  %v633 = vadd.f32 0.0, %v632
  %v634 = vpop.f32.mrb[0].mxu0
  %635 = vmatprep.mubr.bf16.mxu0 0
  %636 = vmatmul.mubr.bf16.gmra.mrb[0].mxu0 %v536
  %v637 = vpop.f32.mrb[0].mxu0
  %v638 = vadd.f32 0.0, %v637
  %v639 = vpop.f32.mrb[0].mxu0
  %v640 = vpop.f32.mrb[0].mxu0
  %v641 = vadd.f32 0.0, %v640
  %v642 = vpop.f32.mrb[0].mxu0
  %643 = vmatprep.mubr.bf16.mxu0 0
  %644 = vmatmul.mubr.bf16.gmra.mrb[0].mxu0 %v539
  %v645 = vpop.f32.mrb[0].mxu0
  %v646 = vadd.f32 0.0, %v645
  %v647 = vpop.f32.mrb[0].mxu0
  %v648 = vpop.f32.mrb[0].mxu0
  %v649 = vadd.f32 0.0, %v648
  %v650 = vpop.f32.mrb[0].mxu0
  %651 = vmatprep.mubr.bf16.mxu0 0
  %652 = vmatmul.mubr.bf16.gmra.mrb[0].mxu0 %v542
  %v653 = vpop.f32.mrb[0].mxu0
  %v654 = vadd.f32 0.0, %v653
  %v655 = vpop.f32.mrb[0].mxu0
  %v656 = vpop.f32.mrb[0].mxu0
  %v657 = vadd.f32 0.0, %v656
  %v658 = vpop.f32.mrb[0].mxu0
  %659 = vmatprep.mubr.bf16.mxu0 0
  %660 = vmatmul.mubr.bf16.gmra.mrb[0].mxu0 %v545
  %v661 = vpop.f32.mrb[0].mxu0
  %v662 = vadd.f32 0.0, %v661
  %v663 = vpop.f32.mrb[0].mxu0
  %v664 = vpop.f32.mrb[0].mxu0
  %v665 = vadd.f32 0.0, %v664
  %v666 = vpop.f32.mrb[0].mxu0
  %667 = vmatprep.mubr.bf16.mxu0 0
  %668 = vmatmul.mubr.bf16.gmra.mrb[0].mxu0 %v548
  %v669 = vpop.f32.mrb[0].mxu0
  %v670 = vadd.f32 0.0, %v669
  %v671 = vpop.f32.mrb[0].mxu0
  %v672 = vpop.f32.mrb[0].mxu0
  %v673 = vadd.f32 0.0, %v672
  %v674 = vpop.f32.mrb[0].mxu0
  %675 = vmatprep.mubr.bf16.mxu0 0
  %676 = vmatmul.mubr.bf16.gmra.mrb[0].mxu0 %v551
  %v677 = vpop.f32.mrb[0].mxu0
  %v678 = vadd.f32 0.0, %v677
  %v679 = vpop.f32.mrb[0].mxu0
  %v680 = vpop.f32.mrb[0].mxu0
  %v681 = vadd.f32 0.0, %v680
  %v682 = vpop.f32.mrb[0].mxu0
  %683 = vmatprep.mubr.bf16.mxu0 0
  %684 = vmatmul.mubr.bf16.gmra.mrb[0].mxu0 %v554
  %v685 = vpop.f32.mrb[0].mxu0
  %v686 = vadd.f32 0.0, %v685
  %v687 = vpop.f32.mrb[0].mxu0
  %v688 = vpop.f32.mrb[0].mxu0
  %v689 = vadd.f32 0.0, %v688
  %v690 = vpop.f32.mrb[0].mxu0
  %691 = vmatprep.mubr.bf16.mxu0 0
  %692 = vmatmul.mubr.bf16.gmra.mrb[0].mxu0 %v557
  %v693 = vpop.f32.mrb[0].mxu0
  %v694 = vadd.f32 0.0, %v693
  %v695 = vpop.f32.mrb[0].mxu0
  %v696 = vpop.f32.mrb[0].mxu0
  %v697 = vadd.f32 0.0, %v696
  %v698 = vpop.f32.mrb[0].mxu0
  %699 = vmatprep.mubr.bf16.mxu0 0
  %700 = vmatmul.mubr.bf16.gmra.mrb[0].mxu0 %v560
  %v701 = vpop.f32.mrb[0].mxu0
  %v702 = vadd.f32 0.0, %v701
  %v703 = vpop.f32.mrb[0].mxu0
  %v704 = vpop.f32.mrb[0].mxu0
  %v705 = vadd.f32 0.0, %v704
  %v706 = vpop.f32.mrb[0].mxu0
  %707 = vmatprep.mubr.bf16.mxu0 0
  %708 = vmatmul.mubr.bf16.gmra.mrb[0].mxu0 %v563
  %v709 = vpop.f32.mrb[0].mxu0
  %v710 = vadd.f32 0.0, %v709
  %v711 = vpop.f32.mrb[0].mxu0
  %v712 = vpop.f32.mrb[0].mxu0
  %v713 = vadd.f32 0.0, %v712
  %v714 = vpop.f32.mrb[0].mxu0
  %715 = vmatprep.mubr.bf16.mxu0 0
  %716 = vmatmul.mubr.bf16.gmra.mrb[0].mxu0 %v566
  %v717 = vpop.f32.mrb[0].mxu0
  %v718 = vadd.f32 0.0, %v717
  %v719 = vpop.f32.mrb[0].mxu0
  %v720 = vpop.f32.mrb[0].mxu0
  %v721 = vadd.f32 0.0, %v720
  %v722 = vpop.f32.mrb[0].mxu0
  %723 = vmatprep.mubr.bf16.mxu0 0
  %724 = vmatmul.mubr.bf16.gmra.mrb[0].mxu0 %v569
  %v725 = vpop.f32.mrb[0].mxu0
  %v726 = vadd.f32 0.0, %v725
  %v727 = vpop.f32.mrb[0].mxu0
  %v728 = vpop.f32.mrb[0].mxu0
  %v729 = vadd.f32 0.0, %v728
  %v730 = vpop.f32.mrb[0].mxu0
  %731 = vdwg.mxu0
  %v732 = vpack.c.bf16 %v609, %v606
  %v733 = vpack.c.bf16 %v617, %v614
  %v734 = vpack.c.bf16 %v625, %v622
  %v735 = vpack.c.bf16 %v633, %v630
  %v736 = vpack.c.bf16 %v641, %v638
  %v737 = vpack.c.bf16 %v649, %v646
  %v738 = vpack.c.bf16 %v657, %v654
  %v739 = vpack.c.bf16 %v665, %v662
  %v740 = vpack.c.bf16 %v673, %v670
  %v741 = vpack.c.bf16 %v681, %v678
  %v742 = vpack.c.bf16 %v689, %v686
  %v743 = vpack.c.bf16 %v697, %v694
  %v744 = vpack.c.bf16 %v705, %v702
  %v745 = vpack.c.bf16 %v713, %v710
  %v746 = vpack.c.bf16 %v721, %v718
  %v747 = vpack.c.bf16 %v729, %v726
  %v749 = vsel %vm522, %v490, 0
  %v752 = vsel %vm522, %v491, 0
  %v755 = vsel %vm522, %v492, 0
  %v758 = vsel %vm522, %v493, 0
  %v761 = vsel %vm522, %v494, 0
  %v764 = vsel %vm522, %v495, 0
  %v767 = vsel %vm522, %v496, 0
  %v770 = vsel %vm522, %v497, 0
  %v773 = vsel %vm522, %v498, 0
  %v776 = vsel %vm522, %v499, 0
  %v779 = vsel %vm522, %v500, 0
  %v782 = vsel %vm522, %v501, 0
  %v785 = vsel %vm522, %v502, 0
  %v788 = vsel %vm522, %v503, 0
  %v791 = vsel %vm522, %v504, 0
  %v794 = vsel %vm522, %v505, 0
  %796 = vmatprep.subr.bf16.mxu0 0
  %797 = vmatpush1.bf16.msra.mxu0 %v518
  %798 = vmatprep.subr.bf16.mxu0 0
  %799 = vmatpush1.bf16.msra.mxu0 %v519
  %800 = vmatprep.subr.bf16.mxu0 0
  %801 = vmatpush1.bf16.msra.mxu0 0
  %802 = vmatprep.subr.bf16.mxu0 0
  %803 = vmatpush1.bf16.msra.mxu0 0
  %804 = vmatprep.subr.bf16.mxu0 0
  %805 = vmatpush1.bf16.msra.mxu0 0
  %806 = vmatprep.subr.bf16.mxu0 0
  %807 = vmatpush1.bf16.msra.mxu0 0
  %808 = vmatprep.subr.bf16.mxu0 0
  %809 = vmatpush1.bf16.msra.mxu0 0
  %810 = vmatprep.subr.bf16.mxu0 0
  %811 = vmatpush1.bf16.msra.mxu0 0
  %812 = vmatprep.subr.bf16.mxu0 0
  %813 = vmatpush1.bf16.msra.mxu0 0
  %814 = vmatprep.subr.bf16.mxu0 0
  %815 = vmatpush1.bf16.msra.mxu0 0
  %816 = vmatprep.subr.bf16.mxu0 0
  %817 = vmatpush1.bf16.msra.mxu0 0
  %818 = vmatprep.subr.bf16.mxu0 0
  %819 = vmatpush1.bf16.msra.mxu0 0
  %820 = vmatprep.subr.bf16.mxu0 0
  %821 = vmatpush1.bf16.msra.mxu0 0
  %822 = vmatprep.subr.bf16.mxu0 0
  %823 = vmatpush1.bf16.msra.mxu0 0
  %824 = vmatprep.subr.bf16.mxu0 0
  %825 = vmatpush1.bf16.msra.mxu0 0
  %826 = vmatprep.subr.bf16.mxu0 0
  %827 = vmatpush1.bf16.msra.mxu0 0
  %828 = vmatprep.mubr.bf16.mxu0 0
  %829 = vmatmul.mubr.bf16.gmra.mrb[0].mxu0 %v749
  %v830 = vpop.f32.mrb[0].mxu0
  %v831 = vadd.f32 0.0, %v830
  %v832 = vpop.f32.mrb[0].mxu0
  %v833 = vpop.f32.mrb[0].mxu0
  %v834 = vadd.f32 0.0, %v833
  %v835 = vpop.f32.mrb[0].mxu0
  %836 = vmatprep.mubr.bf16.mxu0 0
  %837 = vmatmul.mubr.bf16.gmra.mrb[0].mxu0 %v752
  %v838 = vpop.f32.mrb[0].mxu0
  %v839 = vadd.f32 0.0, %v838
  %v840 = vpop.f32.mrb[0].mxu0
  %v841 = vpop.f32.mrb[0].mxu0
  %v842 = vadd.f32 0.0, %v841
  %v843 = vpop.f32.mrb[0].mxu0
  %844 = vmatprep.mubr.bf16.mxu0 0
  %845 = vmatmul.mubr.bf16.gmra.mrb[0].mxu0 %v755
  %v846 = vpop.f32.mrb[0].mxu0
  %v847 = vadd.f32 0.0, %v846
  %v848 = vpop.f32.mrb[0].mxu0
  %v849 = vpop.f32.mrb[0].mxu0
  %v850 = vadd.f32 0.0, %v849
  %v851 = vpop.f32.mrb[0].mxu0
  %852 = vmatprep.mubr.bf16.mxu0 0
  %853 = vmatmul.mubr.bf16.gmra.mrb[0].mxu0 %v758
  %v854 = vpop.f32.mrb[0].mxu0
  %v855 = vadd.f32 0.0, %v854
  %v856 = vpop.f32.mrb[0].mxu0
  %v857 = vpop.f32.mrb[0].mxu0
  %v858 = vadd.f32 0.0, %v857
  %v859 = vpop.f32.mrb[0].mxu0
  %860 = vmatprep.mubr.bf16.mxu0 0
  %861 = vmatmul.mubr.bf16.gmra.mrb[0].mxu0 %v761
  %v862 = vpop.f32.mrb[0].mxu0
  %v863 = vadd.f32 0.0, %v862
  %v864 = vpop.f32.mrb[0].mxu0
  %v865 = vpop.f32.mrb[0].mxu0
  %v866 = vadd.f32 0.0, %v865
  %v867 = vpop.f32.mrb[0].mxu0
  %868 = vmatprep.mubr.bf16.mxu0 0
  %869 = vmatmul.mubr.bf16.gmra.mrb[0].mxu0 %v764
  %v870 = vpop.f32.mrb[0].mxu0
  %v871 = vadd.f32 0.0, %v870
  %v872 = vpop.f32.mrb[0].mxu0
  %v873 = vpop.f32.mrb[0].mxu0
  %v874 = vadd.f32 0.0, %v873
  %v875 = vpop.f32.mrb[0].mxu0
  %876 = vmatprep.mubr.bf16.mxu0 0
  %877 = vmatmul.mubr.bf16.gmra.mrb[0].mxu0 %v767
  %v878 = vpop.f32.mrb[0].mxu0
  %v879 = vadd.f32 0.0, %v878
  %v880 = vpop.f32.mrb[0].mxu0
  %v881 = vpop.f32.mrb[0].mxu0
  %v882 = vadd.f32 0.0, %v881
  %v883 = vpop.f32.mrb[0].mxu0
  %884 = vmatprep.mubr.bf16.mxu0 0
  %885 = vmatmul.mubr.bf16.gmra.mrb[0].mxu0 %v770
  %v886 = vpop.f32.mrb[0].mxu0
  %v887 = vadd.f32 0.0, %v886
  %v888 = vpop.f32.mrb[0].mxu0
  %v889 = vpop.f32.mrb[0].mxu0
  %v890 = vadd.f32 0.0, %v889
  %v891 = vpop.f32.mrb[0].mxu0
  %892 = vmatprep.mubr.bf16.mxu0 0
  %893 = vmatmul.mubr.bf16.gmra.mrb[0].mxu0 %v773
  %v894 = vpop.f32.mrb[0].mxu0
  %v895 = vadd.f32 0.0, %v894
  %v896 = vpop.f32.mrb[0].mxu0
  %v897 = vpop.f32.mrb[0].mxu0
  %v898 = vadd.f32 0.0, %v897
  %v899 = vpop.f32.mrb[0].mxu0
  %900 = vmatprep.mubr.bf16.mxu0 0
  %901 = vmatmul.mubr.bf16.gmra.mrb[0].mxu0 %v776
  %v902 = vpop.f32.mrb[0].mxu0
  %v903 = vadd.f32 0.0, %v902
  %v904 = vpop.f32.mrb[0].mxu0
  %v905 = vpop.f32.mrb[0].mxu0
  %v906 = vadd.f32 0.0, %v905
  %v907 = vpop.f32.mrb[0].mxu0
  %908 = vmatprep.mubr.bf16.mxu0 0
  %909 = vmatmul.mubr.bf16.gmra.mrb[0].mxu0 %v779
  %v910 = vpop.f32.mrb[0].mxu0
  %v911 = vadd.f32 0.0, %v910
  %v912 = vpop.f32.mrb[0].mxu0
  %v913 = vpop.f32.mrb[0].mxu0
  %v914 = vadd.f32 0.0, %v913
  %v915 = vpop.f32.mrb[0].mxu0
  %916 = vmatprep.mubr.bf16.mxu0 0
  %917 = vmatmul.mubr.bf16.gmra.mrb[0].mxu0 %v782
  %v918 = vpop.f32.mrb[0].mxu0
  %v919 = vadd.f32 0.0, %v918
  %v920 = vpop.f32.mrb[0].mxu0
  %v921 = vpop.f32.mrb[0].mxu0
  %v922 = vadd.f32 0.0, %v921
  %v923 = vpop.f32.mrb[0].mxu0
  %924 = vmatprep.mubr.bf16.mxu0 0
  %925 = vmatmul.mubr.bf16.gmra.mrb[0].mxu0 %v785
  %v926 = vpop.f32.mrb[0].mxu0
  %v927 = vadd.f32 0.0, %v926
  %v928 = vpop.f32.mrb[0].mxu0
  %v929 = vpop.f32.mrb[0].mxu0
  %v930 = vadd.f32 0.0, %v929
  %v931 = vpop.f32.mrb[0].mxu0
  %932 = vmatprep.mubr.bf16.mxu0 0
  %933 = vmatmul.mubr.bf16.gmra.mrb[0].mxu0 %v788
  %v934 = vpop.f32.mrb[0].mxu0
  %v935 = vadd.f32 0.0, %v934
  %v936 = vpop.f32.mrb[0].mxu0
  %v937 = vpop.f32.mrb[0].mxu0
  %v938 = vadd.f32 0.0, %v937
  %v939 = vpop.f32.mrb[0].mxu0
  %940 = vmatprep.mubr.bf16.mxu0 0
  %941 = vmatmul.mubr.bf16.gmra.mrb[0].mxu0 %v791
  %v942 = vpop.f32.mrb[0].mxu0
  %v943 = vadd.f32 0.0, %v942
  %v944 = vpop.f32.mrb[0].mxu0
  %v945 = vpop.f32.mrb[0].mxu0
  %v946 = vadd.f32 0.0, %v945
  %v947 = vpop.f32.mrb[0].mxu0
  %948 = vmatprep.mubr.bf16.mxu0 0
  %949 = vmatmul.mubr.bf16.gmra.mrb[0].mxu0 %v794
  %v950 = vpop.f32.mrb[0].mxu0
  %v951 = vadd.f32 0.0, %v950
  %v952 = vpop.f32.mrb[0].mxu0
  %v953 = vpop.f32.mrb[0].mxu0
  %v954 = vadd.f32 0.0, %v953
  %v955 = vpop.f32.mrb[0].mxu0
  %956 = vdwg.mxu0
  %v957 = vpack.c.bf16 %v834, %v831
  %v958 = vpack.c.bf16 %v842, %v839
  %v959 = vpack.c.bf16 %v850, %v847
  %v960 = vpack.c.bf16 %v858, %v855
  %v961 = vpack.c.bf16 %v866, %v863
  %v962 = vpack.c.bf16 %v874, %v871
  %v963 = vpack.c.bf16 %v882, %v879
  %v964 = vpack.c.bf16 %v890, %v887
  %v965 = vpack.c.bf16 %v898, %v895
  %v966 = vpack.c.bf16 %v906, %v903
  %v967 = vpack.c.bf16 %v914, %v911
  %v968 = vpack.c.bf16 %v922, %v919
  %v969 = vpack.c.bf16 %v930, %v927
  %v970 = vpack.c.bf16 %v938, %v935
  %v971 = vpack.c.bf16 %v946, %v943
  %v972 = vpack.c.bf16 %v954, %v951
  %v973 = vld [vmem:[%s3] sm:$0xf]
  %v974 = vld [vmem:[%s3 + $0x4] sm:$0xf]
  %v975 = vld [vmem:[%s3 + $0x8] sm:$0xf]
  %v976 = vld [vmem:[%s3 + $0xc] sm:$0xf]
  %v977 = vld [vmem:[%s3 + $0x10] sm:$0xf]
  %v978 = vld [vmem:[%s3 + $0x14] sm:$0xf]
  %v979 = vld [vmem:[%s3 + $0x18] sm:$0xf]
  %v980 = vld [vmem:[%s3 + $0x1c] sm:$0xf]
  %v981 = vld [vmem:[%s4] sm:$0xf]
  %v982 = vld [vmem:[%s4 + $0x4] sm:$0xf]
  %v983 = vld [vmem:[%s4 + $0x8] sm:$0xf]
  %v984 = vld [vmem:[%s4 + $0xc] sm:$0xf]
  %v985 = vld [vmem:[%s4 + $0x10] sm:$0xf]
  %v986 = vld [vmem:[%s4 + $0x14] sm:$0xf]
  %v987 = vld [vmem:[%s4 + $0x18] sm:$0xf]
  %v988 = vld [vmem:[%s4 + $0x1c] sm:$0xf]
  %v997 = vunpack.c.l.b16 %v981
  %v998 = vunpack.c.l.b16 %v982
  %v999 = vunpack.c.l.b16 %v983
  %v1000 = vunpack.c.l.b16 %v984
  %v1001 = vunpack.c.l.b16 %v985
  %v1002 = vunpack.c.l.b16 %v986
  %v1003 = vunpack.c.l.b16 %v987
  %v1004 = vunpack.c.l.b16 %v988
  %v1005 = vpack.c.b16 %v998, %v997
  %v1006 = vpack.c.b16 %v1000, %v999
  %v1007 = vpack.c.b16 %v1002, %v1001
  %v1008 = vpack.c.b16 %v1004, %v1003
  %vm1013 = vcmask 523264
  %v1015 = vsel %vm1013, %v957, 0
  %v1018 = vsel %vm1013, %v958, 0
  %v1021 = vsel %vm1013, %v959, 0
  %v1024 = vsel %vm1013, %v960, 0
  %v1027 = vsel %vm1013, %v961, 0
  %v1030 = vsel %vm1013, %v962, 0
  %v1033 = vsel %vm1013, %v963, 0
  %v1036 = vsel %vm1013, %v964, 0
  %v1039 = vsel %vm1013, %v965, 0
  %v1042 = vsel %vm1013, %v966, 0
  %v1045 = vsel %vm1013, %v967, 0
  %v1048 = vsel %vm1013, %v968, 0
  %v1051 = vsel %vm1013, %v969, 0
  %v1054 = vsel %vm1013, %v970, 0
  %v1057 = vsel %vm1013, %v971, 0
  %v1060 = vsel %vm1013, %v972, 0
  %1062 = vmatprep.subr.bf16.mxu0 0
  %1063 = vmatpush1.bf16.msra.mxu0 %v1005
  %1064 = vmatprep.subr.bf16.mxu0 0
  %1065 = vmatpush1.bf16.msra.mxu0 %v1006
  %1066 = vmatprep.subr.bf16.mxu0 0
  %1067 = vmatpush1.bf16.msra.mxu0 %v1007
  %1068 = vmatprep.subr.bf16.mxu0 0
  %1069 = vmatpush1.bf16.msra.mxu0 %v1008
  %1070 = vmatprep.subr.bf16.mxu0 0
  %1071 = vmatpush1.bf16.msra.mxu0 0
  %1072 = vmatprep.subr.bf16.mxu0 0
  %1073 = vmatpush1.bf16.msra.mxu0 0
  %1074 = vmatprep.subr.bf16.mxu0 0
  %1075 = vmatpush1.bf16.msra.mxu0 0
  %1076 = vmatprep.subr.bf16.mxu0 0
  %1077 = vmatpush1.bf16.msra.mxu0 0
  %1078 = vmatprep.subr.bf16.mxu0 0
  %1079 = vmatpush1.bf16.msra.mxu0 0
  %1080 = vmatprep.subr.bf16.mxu0 0
  %1081 = vmatpush1.bf16.msra.mxu0 0
  %1082 = vmatprep.subr.bf16.mxu0 0
  %1083 = vmatpush1.bf16.msra.mxu0 0
  %1084 = vmatprep.subr.bf16.mxu0 0
  %1085 = vmatpush1.bf16.msra.mxu0 0
  %1086 = vmatprep.subr.bf16.mxu0 0
  %1087 = vmatpush1.bf16.msra.mxu0 0
  %1088 = vmatprep.subr.bf16.mxu0 0
  %1089 = vmatpush1.bf16.msra.mxu0 0
  %1090 = vmatprep.subr.bf16.mxu0 0
  %1091 = vmatpush1.bf16.msra.mxu0 0
  %1092 = vmatprep.subr.bf16.mxu0 0
  %1093 = vmatpush1.bf16.msra.mxu0 0
  %1094 = vmatprep.mubr.bf16.mxu0 0
  %1095 = vmatmul.mubr.bf16.gmra.mrb[0].mxu0 %v1015
  %v1096 = vpop.f32.mrb[0].mxu0
  %v1097 = vadd.f32 0.0, %v1096
  %v1098 = vpop.f32.mrb[0].mxu0
  %v1099 = vpop.f32.mrb[0].mxu0
  %v1100 = vadd.f32 0.0, %v1099
  %v1101 = vpop.f32.mrb[0].mxu0
  %1102 = vmatprep.mubr.bf16.mxu0 0
  %1103 = vmatmul.mubr.bf16.gmra.mrb[0].mxu0 %v1018
  %v1104 = vpop.f32.mrb[0].mxu0
  %v1105 = vadd.f32 0.0, %v1104
  %v1106 = vpop.f32.mrb[0].mxu0
  %v1107 = vpop.f32.mrb[0].mxu0
  %v1108 = vadd.f32 0.0, %v1107
  %v1109 = vpop.f32.mrb[0].mxu0
  %1110 = vmatprep.mubr.bf16.mxu0 0
  %1111 = vmatmul.mubr.bf16.gmra.mrb[0].mxu0 %v1021
  %v1112 = vpop.f32.mrb[0].mxu0
  %v1113 = vadd.f32 0.0, %v1112
  %v1114 = vpop.f32.mrb[0].mxu0
  %v1115 = vpop.f32.mrb[0].mxu0
  %v1116 = vadd.f32 0.0, %v1115
  %v1117 = vpop.f32.mrb[0].mxu0
  %1118 = vmatprep.mubr.bf16.mxu0 0
  %1119 = vmatmul.mubr.bf16.gmra.mrb[0].mxu0 %v1024
  %v1120 = vpop.f32.mrb[0].mxu0
  %v1121 = vadd.f32 0.0, %v1120
  %v1122 = vpop.f32.mrb[0].mxu0
  %v1123 = vpop.f32.mrb[0].mxu0
  %v1124 = vadd.f32 0.0, %v1123
  %v1125 = vpop.f32.mrb[0].mxu0
  %1126 = vmatprep.mubr.bf16.mxu0 0
  %1127 = vmatmul.mubr.bf16.gmra.mrb[0].mxu0 %v1027
  %v1128 = vpop.f32.mrb[0].mxu0
  %v1129 = vadd.f32 0.0, %v1128
  %v1130 = vpop.f32.mrb[0].mxu0
  %v1131 = vpop.f32.mrb[0].mxu0
  %v1132 = vadd.f32 0.0, %v1131
  %v1133 = vpop.f32.mrb[0].mxu0
  %1134 = vmatprep.mubr.bf16.mxu0 0
  %1135 = vmatmul.mubr.bf16.gmra.mrb[0].mxu0 %v1030
  %v1136 = vpop.f32.mrb[0].mxu0
  %v1137 = vadd.f32 0.0, %v1136
  %v1138 = vpop.f32.mrb[0].mxu0
  %v1139 = vpop.f32.mrb[0].mxu0
  %v1140 = vadd.f32 0.0, %v1139
  %v1141 = vpop.f32.mrb[0].mxu0
  %1142 = vmatprep.mubr.bf16.mxu0 0
  %1143 = vmatmul.mubr.bf16.gmra.mrb[0].mxu0 %v1033
  %v1144 = vpop.f32.mrb[0].mxu0
  %v1145 = vadd.f32 0.0, %v1144
  %v1146 = vpop.f32.mrb[0].mxu0
  %v1147 = vpop.f32.mrb[0].mxu0
  %v1148 = vadd.f32 0.0, %v1147
  %v1149 = vpop.f32.mrb[0].mxu0
  %1150 = vmatprep.mubr.bf16.mxu0 0
  %1151 = vmatmul.mubr.bf16.gmra.mrb[0].mxu0 %v1036
  %v1152 = vpop.f32.mrb[0].mxu0
  %v1153 = vadd.f32 0.0, %v1152
  %v1154 = vpop.f32.mrb[0].mxu0
  %v1155 = vpop.f32.mrb[0].mxu0
  %v1156 = vadd.f32 0.0, %v1155
  %v1157 = vpop.f32.mrb[0].mxu0
  %1158 = vmatprep.mubr.bf16.mxu0 0
  %1159 = vmatmul.mubr.bf16.gmra.mrb[0].mxu0 %v1039
  %v1160 = vpop.f32.mrb[0].mxu0
  %v1161 = vadd.f32 0.0, %v1160
  %v1162 = vpop.f32.mrb[0].mxu0
  %v1163 = vpop.f32.mrb[0].mxu0
  %v1164 = vadd.f32 0.0, %v1163
  %v1165 = vpop.f32.mrb[0].mxu0
  %1166 = vmatprep.mubr.bf16.mxu0 0
  %1167 = vmatmul.mubr.bf16.gmra.mrb[0].mxu0 %v1042
  %v1168 = vpop.f32.mrb[0].mxu0
  %v1169 = vadd.f32 0.0, %v1168
  %v1170 = vpop.f32.mrb[0].mxu0
  %v1171 = vpop.f32.mrb[0].mxu0
  %v1172 = vadd.f32 0.0, %v1171
  %v1173 = vpop.f32.mrb[0].mxu0
  %1174 = vmatprep.mubr.bf16.mxu0 0
  %1175 = vmatmul.mubr.bf16.gmra.mrb[0].mxu0 %v1045
  %v1176 = vpop.f32.mrb[0].mxu0
  %v1177 = vadd.f32 0.0, %v1176
  %v1178 = vpop.f32.mrb[0].mxu0
  %v1179 = vpop.f32.mrb[0].mxu0
  %v1180 = vadd.f32 0.0, %v1179
  %v1181 = vpop.f32.mrb[0].mxu0
  %1182 = vmatprep.mubr.bf16.mxu0 0
  %1183 = vmatmul.mubr.bf16.gmra.mrb[0].mxu0 %v1048
  %v1184 = vpop.f32.mrb[0].mxu0
  %v1185 = vadd.f32 0.0, %v1184
  %v1186 = vpop.f32.mrb[0].mxu0
  %v1187 = vpop.f32.mrb[0].mxu0
  %v1188 = vadd.f32 0.0, %v1187
  %v1189 = vpop.f32.mrb[0].mxu0
  %1190 = vmatprep.mubr.bf16.mxu0 0
  %1191 = vmatmul.mubr.bf16.gmra.mrb[0].mxu0 %v1051
  %v1192 = vpop.f32.mrb[0].mxu0
  %v1193 = vadd.f32 0.0, %v1192
  %v1194 = vpop.f32.mrb[0].mxu0
  %v1195 = vpop.f32.mrb[0].mxu0
  %v1196 = vadd.f32 0.0, %v1195
  %v1197 = vpop.f32.mrb[0].mxu0
  %1198 = vmatprep.mubr.bf16.mxu0 0
  %1199 = vmatmul.mubr.bf16.gmra.mrb[0].mxu0 %v1054
  %v1200 = vpop.f32.mrb[0].mxu0
  %v1201 = vadd.f32 0.0, %v1200
  %v1202 = vpop.f32.mrb[0].mxu0
  %v1203 = vpop.f32.mrb[0].mxu0
  %v1204 = vadd.f32 0.0, %v1203
  %v1205 = vpop.f32.mrb[0].mxu0
  %1206 = vmatprep.mubr.bf16.mxu0 0
  %1207 = vmatmul.mubr.bf16.gmra.mrb[0].mxu0 %v1057
  %v1208 = vpop.f32.mrb[0].mxu0
  %v1209 = vadd.f32 0.0, %v1208
  %v1210 = vpop.f32.mrb[0].mxu0
  %v1211 = vpop.f32.mrb[0].mxu0
  %v1212 = vadd.f32 0.0, %v1211
  %v1213 = vpop.f32.mrb[0].mxu0
  %1214 = vmatprep.mubr.bf16.mxu0 0
  %1215 = vmatmul.mubr.bf16.gmra.mrb[0].mxu0 %v1060
  %v1216 = vpop.f32.mrb[0].mxu0
  %v1217 = vadd.f32 0.0, %v1216
  %v1218 = vpop.f32.mrb[0].mxu0
  %v1219 = vpop.f32.mrb[0].mxu0
  %v1220 = vadd.f32 0.0, %v1219
  %v1221 = vpop.f32.mrb[0].mxu0
  %1222 = vdwg.mxu0
  %v1231 = vunpack.c.l.b16 %v973
  %v1232 = vunpack.c.l.b16 %v974
  %v1233 = vunpack.c.l.b16 %v975
  %v1234 = vunpack.c.l.b16 %v976
  %v1235 = vunpack.c.l.b16 %v977
  %v1236 = vunpack.c.l.b16 %v978
  %v1237 = vunpack.c.l.b16 %v979
  %v1238 = vunpack.c.l.b16 %v980
  %v1239 = vpack.c.b16 %v1232, %v1231
  %v1240 = vpack.c.b16 %v1234, %v1233
  %v1241 = vpack.c.b16 %v1236, %v1235
  %v1242 = vpack.c.b16 %v1238, %v1237
  %v1248 = vsel %vm1013, %v732, 0
  %v1251 = vsel %vm1013, %v733, 0
  %v1254 = vsel %vm1013, %v734, 0
  %v1257 = vsel %vm1013, %v735, 0
  %v1260 = vsel %vm1013, %v736, 0
  %v1263 = vsel %vm1013, %v737, 0
  %v1266 = vsel %vm1013, %v738, 0
  %v1269 = vsel %vm1013, %v739, 0
  %v1272 = vsel %vm1013, %v740, 0
  %v1275 = vsel %vm1013, %v741, 0
  %v1278 = vsel %vm1013, %v742, 0
  %v1281 = vsel %vm1013, %v743, 0
  %v1284 = vsel %vm1013, %v744, 0
  %v1287 = vsel %vm1013, %v745, 0
  %v1290 = vsel %vm1013, %v746, 0
  %v1293 = vsel %vm1013, %v747, 0
  %1295 = vmatprep.subr.bf16.mxu0 0
  %1296 = vmatpush1.bf16.msra.mxu0 %v1239
  %1297 = vmatprep.subr.bf16.mxu0 0
  %1298 = vmatpush1.bf16.msra.mxu0 %v1240
  %1299 = vmatprep.subr.bf16.mxu0 0
  %1300 = vmatpush1.bf16.msra.mxu0 %v1241
  %1301 = vmatprep.subr.bf16.mxu0 0
  %1302 = vmatpush1.bf16.msra.mxu0 %v1242
  %1303 = vmatprep.subr.bf16.mxu0 0
  %1304 = vmatpush1.bf16.msra.mxu0 0
  %1305 = vmatprep.subr.bf16.mxu0 0
  %1306 = vmatpush1.bf16.msra.mxu0 0
  %1307 = vmatprep.subr.bf16.mxu0 0
  %1308 = vmatpush1.bf16.msra.mxu0 0
  %1309 = vmatprep.subr.bf16.mxu0 0
  %1310 = vmatpush1.bf16.msra.mxu0 0
  %1311 = vmatprep.subr.bf16.mxu0 0
  %1312 = vmatpush1.bf16.msra.mxu0 0
  %1313 = vmatprep.subr.bf16.mxu0 0
  %1314 = vmatpush1.bf16.msra.mxu0 0
  %1315 = vmatprep.subr.bf16.mxu0 0
  %1316 = vmatpush1.bf16.msra.mxu0 0
  %1317 = vmatprep.subr.bf16.mxu0 0
  %1318 = vmatpush1.bf16.msra.mxu0 0
  %1319 = vmatprep.subr.bf16.mxu0 0
  %1320 = vmatpush1.bf16.msra.mxu0 0
  %1321 = vmatprep.subr.bf16.mxu0 0
  %1322 = vmatpush1.bf16.msra.mxu0 0
  %1323 = vmatprep.subr.bf16.mxu0 0
  %1324 = vmatpush1.bf16.msra.mxu0 0
  %1325 = vmatprep.subr.bf16.mxu0 0
  %1326 = vmatpush1.bf16.msra.mxu0 0
  %1327 = vmatprep.mubr.bf16.mxu0 0
  %1328 = vmatmul.mubr.bf16.gmra.mrb[0].mxu0 %v1248
  %v1329 = vpop.f32.mrb[0].mxu0
  %v1330 = vadd.f32 %v1097, %v1329
  %v1331 = vpop.f32.mrb[0].mxu0
  %v1332 = vpop.f32.mrb[0].mxu0
  %v1333 = vadd.f32 %v1100, %v1332
  %v1334 = vpop.f32.mrb[0].mxu0
  %1335 = vmatprep.mubr.bf16.mxu0 0
  %1336 = vmatmul.mubr.bf16.gmra.mrb[0].mxu0 %v1251
  %v1337 = vpop.f32.mrb[0].mxu0
  %v1338 = vadd.f32 %v1105, %v1337
  %v1339 = vpop.f32.mrb[0].mxu0
  %v1340 = vpop.f32.mrb[0].mxu0
  %v1341 = vadd.f32 %v1108, %v1340
  %v1342 = vpop.f32.mrb[0].mxu0
  %1343 = vmatprep.mubr.bf16.mxu0 0
  %1344 = vmatmul.mubr.bf16.gmra.mrb[0].mxu0 %v1254
  %v1345 = vpop.f32.mrb[0].mxu0
  %v1346 = vadd.f32 %v1113, %v1345
  %v1347 = vpop.f32.mrb[0].mxu0
  %v1348 = vpop.f32.mrb[0].mxu0
  %v1349 = vadd.f32 %v1116, %v1348
  %v1350 = vpop.f32.mrb[0].mxu0
  %1351 = vmatprep.mubr.bf16.mxu0 0
  %1352 = vmatmul.mubr.bf16.gmra.mrb[0].mxu0 %v1257
  %v1353 = vpop.f32.mrb[0].mxu0
  %v1354 = vadd.f32 %v1121, %v1353
  %v1355 = vpop.f32.mrb[0].mxu0
  %v1356 = vpop.f32.mrb[0].mxu0
  %v1357 = vadd.f32 %v1124, %v1356
  %v1358 = vpop.f32.mrb[0].mxu0
  %1359 = vmatprep.mubr.bf16.mxu0 0
  %1360 = vmatmul.mubr.bf16.gmra.mrb[0].mxu0 %v1260
  %v1361 = vpop.f32.mrb[0].mxu0
  %v1362 = vadd.f32 %v1129, %v1361
  %v1363 = vpop.f32.mrb[0].mxu0
  %v1364 = vpop.f32.mrb[0].mxu0
  %v1365 = vadd.f32 %v1132, %v1364
  %v1366 = vpop.f32.mrb[0].mxu0
  %1367 = vmatprep.mubr.bf16.mxu0 0
  %1368 = vmatmul.mubr.bf16.gmra.mrb[0].mxu0 %v1263
  %v1369 = vpop.f32.mrb[0].mxu0
  %v1370 = vadd.f32 %v1137, %v1369
  %v1371 = vpop.f32.mrb[0].mxu0
  %v1372 = vpop.f32.mrb[0].mxu0
  %v1373 = vadd.f32 %v1140, %v1372
  %v1374 = vpop.f32.mrb[0].mxu0
  %1375 = vmatprep.mubr.bf16.mxu0 0
  %1376 = vmatmul.mubr.bf16.gmra.mrb[0].mxu0 %v1266
  %v1377 = vpop.f32.mrb[0].mxu0
  %v1378 = vadd.f32 %v1145, %v1377
  %v1379 = vpop.f32.mrb[0].mxu0
  %v1380 = vpop.f32.mrb[0].mxu0
  %v1381 = vadd.f32 %v1148, %v1380
  %v1382 = vpop.f32.mrb[0].mxu0
  %1383 = vmatprep.mubr.bf16.mxu0 0
  %1384 = vmatmul.mubr.bf16.gmra.mrb[0].mxu0 %v1269
  %v1385 = vpop.f32.mrb[0].mxu0
  %v1386 = vadd.f32 %v1153, %v1385
  %v1387 = vpop.f32.mrb[0].mxu0
  %v1388 = vpop.f32.mrb[0].mxu0
  %v1389 = vadd.f32 %v1156, %v1388
  %v1390 = vpop.f32.mrb[0].mxu0
  %1391 = vmatprep.mubr.bf16.mxu0 0
  %1392 = vmatmul.mubr.bf16.gmra.mrb[0].mxu0 %v1272
  %v1393 = vpop.f32.mrb[0].mxu0
  %v1394 = vadd.f32 %v1161, %v1393
  %v1395 = vpop.f32.mrb[0].mxu0
  %v1396 = vpop.f32.mrb[0].mxu0
  %v1397 = vadd.f32 %v1164, %v1396
  %v1398 = vpop.f32.mrb[0].mxu0
  %1399 = vmatprep.mubr.bf16.mxu0 0
  %1400 = vmatmul.mubr.bf16.gmra.mrb[0].mxu0 %v1275
  %v1401 = vpop.f32.mrb[0].mxu0
  %v1402 = vadd.f32 %v1169, %v1401
  %v1403 = vpop.f32.mrb[0].mxu0
  %v1404 = vpop.f32.mrb[0].mxu0
  %v1405 = vadd.f32 %v1172, %v1404
  %v1406 = vpop.f32.mrb[0].mxu0
  %1407 = vmatprep.mubr.bf16.mxu0 0
  %1408 = vmatmul.mubr.bf16.gmra.mrb[0].mxu0 %v1278
  %v1409 = vpop.f32.mrb[0].mxu0
  %v1410 = vadd.f32 %v1177, %v1409
  %v1411 = vpop.f32.mrb[0].mxu0
  %v1412 = vpop.f32.mrb[0].mxu0
  %v1413 = vadd.f32 %v1180, %v1412
  %v1414 = vpop.f32.mrb[0].mxu0
  %1415 = vmatprep.mubr.bf16.mxu0 0
  %1416 = vmatmul.mubr.bf16.gmra.mrb[0].mxu0 %v1281
  %v1417 = vpop.f32.mrb[0].mxu0
  %v1418 = vadd.f32 %v1185, %v1417
  %v1419 = vpop.f32.mrb[0].mxu0
  %v1420 = vpop.f32.mrb[0].mxu0
  %v1421 = vadd.f32 %v1188, %v1420
  %v1422 = vpop.f32.mrb[0].mxu0
  %1423 = vmatprep.mubr.bf16.mxu0 0
  %1424 = vmatmul.mubr.bf16.gmra.mrb[0].mxu0 %v1284
  %v1425 = vpop.f32.mrb[0].mxu0
  %v1426 = vadd.f32 %v1193, %v1425
  %v1427 = vpop.f32.mrb[0].mxu0
  %v1428 = vpop.f32.mrb[0].mxu0
  %v1429 = vadd.f32 %v1196, %v1428
  %v1430 = vpop.f32.mrb[0].mxu0
  %1431 = vmatprep.mubr.bf16.mxu0 0
  %1432 = vmatmul.mubr.bf16.gmra.mrb[0].mxu0 %v1287
  %v1433 = vpop.f32.mrb[0].mxu0
  %v1434 = vadd.f32 %v1201, %v1433
  %v1435 = vpop.f32.mrb[0].mxu0
  %v1436 = vpop.f32.mrb[0].mxu0
  %v1437 = vadd.f32 %v1204, %v1436
  %v1438 = vpop.f32.mrb[0].mxu0
  %1439 = vmatprep.mubr.bf16.mxu0 0
  %1440 = vmatmul.mubr.bf16.gmra.mrb[0].mxu0 %v1290
  %v1441 = vpop.f32.mrb[0].mxu0
  %v1442 = vadd.f32 %v1209, %v1441
  %v1443 = vpop.f32.mrb[0].mxu0
  %v1444 = vpop.f32.mrb[0].mxu0
  %v1445 = vadd.f32 %v1212, %v1444
  %v1446 = vpop.f32.mrb[0].mxu0
  %1447 = vmatprep.mubr.bf16.mxu0 0
  %1448 = vmatmul.mubr.bf16.gmra.mrb[0].mxu0 %v1293
  %v1449 = vpop.f32.mrb[0].mxu0
  %v1450 = vadd.f32 %v1217, %v1449
  %v1451 = vpop.f32.mrb[0].mxu0
  %v1452 = vpop.f32.mrb[0].mxu0
  %v1453 = vadd.f32 %v1220, %v1452
  %v1454 = vpop.f32.mrb[0].mxu0
  %1455 = vdwg.mxu0
  %v1456 = vld [vmem:[%s5] sm:$0x1]
  %v1458 = vlaneseq
  %v1459 = vshrl.u32 %v1458, 7
  %v1460 = vsub.s32 0, %v1459
  %v1461 = vrot.slane %v1456, %v1460
  %v1463 = vadd.f32 %v1330, %v1461
  %v1464 = vadd.f32 %v1333, %v1461
  %v1465 = vadd.f32 %v1338, %v1461
  %v1466 = vadd.f32 %v1341, %v1461
  %v1467 = vadd.f32 %v1346, %v1461
  %v1468 = vadd.f32 %v1349, %v1461
  %v1469 = vadd.f32 %v1354, %v1461
  %v1470 = vadd.f32 %v1357, %v1461
  %v1471 = vadd.f32 %v1362, %v1461
  %v1472 = vadd.f32 %v1365, %v1461
  %v1473 = vadd.f32 %v1370, %v1461
  %v1474 = vadd.f32 %v1373, %v1461
  %v1475 = vadd.f32 %v1378, %v1461
  %v1476 = vadd.f32 %v1381, %v1461
  %v1477 = vadd.f32 %v1386, %v1461
  %v1478 = vadd.f32 %v1389, %v1461
  %v1479 = vadd.f32 %v1394, %v1461
  %v1480 = vadd.f32 %v1397, %v1461
  %v1481 = vadd.f32 %v1402, %v1461
  %v1482 = vadd.f32 %v1405, %v1461
  %v1483 = vadd.f32 %v1410, %v1461
  %v1484 = vadd.f32 %v1413, %v1461
  %v1485 = vadd.f32 %v1418, %v1461
  %v1486 = vadd.f32 %v1421, %v1461
  %v1487 = vadd.f32 %v1426, %v1461
  %v1488 = vadd.f32 %v1429, %v1461
  %v1489 = vadd.f32 %v1434, %v1461
  %v1490 = vadd.f32 %v1437, %v1461
  %v1491 = vadd.f32 %v1442, %v1461
  %v1492 = vadd.f32 %v1445, %v1461
  %v1493 = vadd.f32 %v1450, %v1461
  %v1494 = vadd.f32 %v1453, %v1461
  %v1495 = vpack.c.bf16 %v1464, %v1463
  %v1496 = vpack.c.bf16 %v1466, %v1465
  %v1497 = vpack.c.bf16 %v1468, %v1467
  %v1498 = vpack.c.bf16 %v1470, %v1469
  %v1499 = vpack.c.bf16 %v1472, %v1471
  %v1500 = vpack.c.bf16 %v1474, %v1473
  %v1501 = vpack.c.bf16 %v1476, %v1475
  %v1502 = vpack.c.bf16 %v1478, %v1477
  %v1503 = vpack.c.bf16 %v1480, %v1479
  %v1504 = vpack.c.bf16 %v1482, %v1481
  %v1505 = vpack.c.bf16 %v1484, %v1483
  %v1506 = vpack.c.bf16 %v1486, %v1485
  %v1507 = vpack.c.bf16 %v1488, %v1487
  %v1508 = vpack.c.bf16 %v1490, %v1489
  %v1509 = vpack.c.bf16 %v1492, %v1491
  %v1510 = vpack.c.bf16 %v1494, %v1493
  %v1527 = vunpack.c.l.b16 %v1495
  %v1528 = vunpack.c.h.b16 %v1495
  %v1529 = vunpack.c.l.b16 %v1496
  %v1530 = vunpack.c.h.b16 %v1496
  %v1531 = vunpack.c.l.b16 %v1497
  %v1532 = vunpack.c.h.b16 %v1497
  %v1533 = vunpack.c.l.b16 %v1498
  %v1534 = vunpack.c.h.b16 %v1498
  %v1535 = vunpack.c.l.b16 %v1499
  %v1536 = vunpack.c.h.b16 %v1499
  %v1537 = vunpack.c.l.b16 %v1500
  %v1538 = vunpack.c.h.b16 %v1500
  %v1539 = vunpack.c.l.b16 %v1501
  %v1540 = vunpack.c.h.b16 %v1501
  %v1541 = vunpack.c.l.b16 %v1502
  %v1542 = vunpack.c.h.b16 %v1502
  %v1543 = vunpack.c.l.b16 %v1503
  %v1544 = vunpack.c.h.b16 %v1503
  %v1545 = vunpack.c.l.b16 %v1504
  %v1546 = vunpack.c.h.b16 %v1504
  %v1547 = vunpack.c.l.b16 %v1505
  %v1548 = vunpack.c.h.b16 %v1505
  %v1549 = vunpack.c.l.b16 %v1506
  %v1550 = vunpack.c.h.b16 %v1506
  %v1551 = vunpack.c.l.b16 %v1507
  %v1552 = vunpack.c.h.b16 %v1507
  %v1553 = vunpack.c.l.b16 %v1508
  %v1554 = vunpack.c.h.b16 %v1508
  %v1555 = vunpack.c.l.b16 %v1509
  %v1556 = vunpack.c.h.b16 %v1509
  %v1557 = vunpack.c.l.b16 %v1510
  %v1558 = vunpack.c.h.b16 %v1510
  %v1559 = vpack.c.b16 %v1527, %v1527
  %v1560 = vpack.c.b16 %v1528, %v1528
  %v1561 = vpack.c.b16 %v1529, %v1529
  %v1562 = vpack.c.b16 %v1530, %v1530
  %v1563 = vpack.c.b16 %v1531, %v1531
  %v1564 = vpack.c.b16 %v1532, %v1532
  %v1565 = vpack.c.b16 %v1533, %v1533
  %v1566 = vpack.c.b16 %v1534, %v1534
  %v1567 = vpack.c.b16 %v1535, %v1535
  %v1568 = vpack.c.b16 %v1536, %v1536
  %v1569 = vpack.c.b16 %v1537, %v1537
  %v1570 = vpack.c.b16 %v1538, %v1538
  %v1571 = vpack.c.b16 %v1539, %v1539
  %v1572 = vpack.c.b16 %v1540, %v1540
  %v1573 = vpack.c.b16 %v1541, %v1541
  %v1574 = vpack.c.b16 %v1542, %v1542
  %v1575 = vpack.c.b16 %v1543, %v1543
  %v1576 = vpack.c.b16 %v1544, %v1544
  %v1577 = vpack.c.b16 %v1545, %v1545
  %v1578 = vpack.c.b16 %v1546, %v1546
  %v1579 = vpack.c.b16 %v1547, %v1547
  %v1580 = vpack.c.b16 %v1548, %v1548
  %v1581 = vpack.c.b16 %v1549, %v1549
  %v1582 = vpack.c.b16 %v1550, %v1550
  %v1583 = vpack.c.b16 %v1551, %v1551
  %v1584 = vpack.c.b16 %v1552, %v1552
  %v1585 = vpack.c.b16 %v1553, %v1553
  %v1586 = vpack.c.b16 %v1554, %v1554
  %v1587 = vpack.c.b16 %v1555, %v1555
  %v1588 = vpack.c.b16 %v1556, %v1556
  %v1589 = vpack.c.b16 %v1557, %v1557
  %v1590 = vpack.c.b16 %v1558, %v1558
  %1623 = vst [vmem:[%s6] sm:$0xf] %v1559
  %1624 = vst [vmem:[%s6 + $0x4] sm:$0xf] %v1560
  %1625 = vst [vmem:[%s6 + $0x8] sm:$0xf] %v1561
  %1626 = vst [vmem:[%s6 + $0xc] sm:$0xf] %v1562
  %1627 = vst [vmem:[%s6 + $0x10] sm:$0xf] %v1563
  %1628 = vst [vmem:[%s6 + $0x14] sm:$0xf] %v1564
  %1629 = vst [vmem:[%s6 + $0x18] sm:$0xf] %v1565
  %1630 = vst [vmem:[%s6 + $0x1c] sm:$0xf] %v1566
  %1631 = vst [vmem:[%s6 + $0x20] sm:$0xf] %v1567
  %1632 = vst [vmem:[%s6 + $0x24] sm:$0xf] %v1568
  %1633 = vst [vmem:[%s6 + $0x28] sm:$0xf] %v1569
  %1634 = vst [vmem:[%s6 + $0x2c] sm:$0xf] %v1570
  %1635 = vst [vmem:[%s6 + $0x30] sm:$0xf] %v1571
  %1636 = vst [vmem:[%s6 + $0x34] sm:$0xf] %v1572
  %1637 = vst [vmem:[%s6 + $0x38] sm:$0xf] %v1573
  %1638 = vst [vmem:[%s6 + $0x3c] sm:$0xf] %v1574
  %1639 = vst [vmem:[%s6 + $0x40] sm:$0xf] %v1575
  %1640 = vst [vmem:[%s6 + $0x44] sm:$0xf] %v1576
  %1641 = vst [vmem:[%s6 + $0x48] sm:$0xf] %v1577
  %1642 = vst [vmem:[%s6 + $0x4c] sm:$0xf] %v1578
  %1643 = vst [vmem:[%s6 + $0x50] sm:$0xf] %v1579
  %1644 = vst [vmem:[%s6 + $0x54] sm:$0xf] %v1580
  %1645 = vst [vmem:[%s6 + $0x58] sm:$0xf] %v1581
  %1646 = vst [vmem:[%s6 + $0x5c] sm:$0xf] %v1582
  %1647 = vst [vmem:[%s6 + $0x60] sm:$0xf] %v1583
  %1648 = vst [vmem:[%s6 + $0x64] sm:$0xf] %v1584
  %1649 = vst [vmem:[%s6 + $0x68] sm:$0xf] %v1585
  %1650 = vst [vmem:[%s6 + $0x6c] sm:$0xf] %v1586
  %1651 = vst [vmem:[%s6 + $0x70] sm:$0xf] %v1587
  %1652 = vst [vmem:[%s6 + $0x74] sm:$0xf] %v1588
  %1653 = vst [vmem:[%s6 + $0x78] sm:$0xf] %v1589
  %1654 = vst [vmem:[%s6 + $0x7c] sm:$0xf] %v1590
  // Predicated region
  $region26: #{mlp_predictor_forward.1} parent=0 // pred_check
    _
  $region27: #{mlp_predictor_forward.1} parent=0 // pred_check_branch
    %1656 = sbr.rel (0) target = $region29
  $region28: #{mlp_predictor_forward.1} parent=0 // pred_region
    _
  $region29: #{mlp_predictor_forward.1} parent=0 // pred_fallthru
    _
  // Predicated region
  $region30: #{mlp_predictor_forward.1} parent=0 // pred_check
    _
  $region31: #{mlp_predictor_forward.1} parent=0 // pred_check_branch
    %1658 = sbr.rel (0) target = $region33
  $region32: #{mlp_predictor_forward.1} parent=0 // pred_region
    _
  $region33: #{mlp_predictor_forward.1} parent=0 // pred_fallthru
    _

</llo_original>
